<compile_context>
chip_gen: v5e
topology: v5e:2x2
jax: 0.10.0
libtpu: 0.0.40
codegen_flags: <defaults>
</compile_context>

<pallas_src>
import functools

import jax
import jax.numpy as jnp
import numpy as np
from jax import lax
from jax.experimental import pallas as pl
from jax.experimental.pallas import tpu as pltpu


# ------------------------------- Pallas kernel ------------------------------ #
def _attn_kernel(x_ref, wqkv_ref, wo_ref, o_ref, ctx_ref, *, heads, seq_len):
    """One grid step processes a block of whole sequences.

    x_ref   : (R, D)   bf16, R = block_seqs * seq_len
    wqkv_ref: (D, 3D)  bf16, whole array resident in VMEM (single-buffered)
    wo_ref  : (D, D)   bf16, whole array resident in VMEM (single-buffered)
    o_ref   : (R, D)   f32
    ctx_ref : (R, D)   bf16 VMEM scratch: per-head context goes into its column
              block, then ONE full-width output projection consumes it.
    """
    x2 = x_ref[...]                                   # (R, D) bf16
    R, D = x2.shape
    B = R // seq_len                                  # sequences in this block
    hd = D // heads
    inv_scale = 1.0 / (float(D) ** 0.5)               # matches torch: 1/sqrt(embed_dim)

    wqkv = wqkv_ref[...]                              # hoisted bf16 weight loads
    wo = wo_ref[...]

    # Fused QKV projection: ONE bf16 MXU matmul (contraction D, output width 3D),
    # f32 accumulation.
    qkv = jnp.dot(x2, wqkv, preferred_element_type=jnp.float32)      # (R, 3D) f32

    # Static unroll over heads; every op inside is batched over the B sequences
    # of the block (3-D dot_general with a single batch dim -> known-good Mosaic
    # lowering).  No per-head output matmul and no concatenate of head outputs.
    # TODO(synk): at real model sizes (hd >= 64, lane-aligned) fuse the heads into
    # one batched dot_general over (B, heads); at hd = 8 the column extraction is
    # a lane-unaligned relayout either way.
    for h in range(heads):
        lo = h * hd
        qh = qkv[:, 0 * D + lo:0 * D + lo + hd].astype(jnp.bfloat16).reshape(B, seq_len, hd)
        kh = qkv[:, 1 * D + lo:1 * D + lo + hd].astype(jnp.bfloat16).reshape(B, seq_len, hd)
        vh = qkv[:, 2 * D + lo:2 * D + lo + hd].astype(jnp.bfloat16).reshape(B, seq_len, hd)

        # energy[b, l, m] = qh[b, l, :] . kh[b, m, :]  (contract hd, batch over b)
        e = lax.dot_general(qh, kh, (((2,), (2,)), ((0,), (0,))),
                            preferred_element_type=jnp.float32) * inv_scale   # (B,L,L) f32

        # Softmax statistics stay f32 (v5e has no bf16 VPU/EUP).
        m = jnp.max(e, axis=-1, keepdims=True)
        p = jnp.exp(e - m)
        s = jnp.sum(p, axis=-1, keepdims=True)        # (B, L, 1) f32

        # ctx[b, l, :] = sum_m p[b, l, m] * vh[b, m, :]  (bf16 MXU operands)
        ctx = lax.dot_general(p.astype(jnp.bfloat16), vh, (((2,), (1,)), ((0,), (0,))),
                              preferred_element_type=jnp.float32)             # (B,L,hd)
        ctx = ctx * pl.reciprocal(s, approx=True)     # softmax denom via EUP vrcp

        # Stash this head's context into its column block (no K=hd matmuls).
        ctx_ref[:, lo:lo + hd] = ctx.reshape(R, hd).astype(jnp.bfloat16)

    # ONE full-width output projection: (R, D) @ (D, D) with contraction K = D.
    out = jnp.dot(ctx_ref[...], wo, preferred_element_type=jnp.float32)
    o_ref[...] = out.astype(o_ref.dtype)


# ----------------------------- block-size selection ------------------------- #
def _vmem_capacity_bytes():
    """Generation-aware VMEM capacity (v5e/v6e: 128 MiB, v7x: 64 MiB per TC)."""
    try:
        info = pltpu.get_tpu_info()
        for name in ("vmem_capacity_bytes", "vmem_bytes", "vmem_size_bytes"):
            cap = getattr(info, name, None)
            if cap:
                return int(cap)
    except Exception:
        pass
    return 64 * 1024 * 1024   # conservative fallback (v7x per-TensorCore)


def _choose_seq_block(n_seq, seq_len, d, heads, budget_bytes):
    """Largest #sequences per block that divides n_seq, keeps the block row count
    sublane-aligned (or covers the full array), and fits the per-step VMEM bill
    (double-buffered bf16 input / f32 output blocks, f32 qkv, live per-head
    softmax tensors, bf16 ctx scratch, 1.5x slack for relayout temporaries).

    A grid of >= 2 steps is preferred when available: it lets v7x shard across
    its 2 TensorCores and costs a single ~0.35us pipeline step on 1-TC parts.
    Fails loudly if even one sequence does not fit the budget."""
    def per_block_bytes(c):
        r = c * seq_len
        io = 2 * r * d * 2 + 2 * r * d * 4            # dbl-buffered bf16 in / f32 out
        qkv = r * 3 * d * 4                           # f32 qkv intermediate
        sm = 2 * c * seq_len * seq_len * 4            # e + p (one head live at a time)
        ctx = r * d * (2 + 4)                         # bf16 ctx scratch + f32 temps
        return int(1.5 * (io + qkv + sm + ctx))

    fitting = []
    for c in range(1, n_seq + 1):
        if n_seq % c:
            continue
        if (c * seq_len) % 8 != 0 and c != n_seq:     # (8,128) rule on the block rows
            continue
        if per_block_bytes(c) <= budget_bytes:
            fitting.append(c)
    if not fitting:
        raise ValueError(
            f"Attention block of even one sequence (seq_len={seq_len}, d={d}) "
            f"exceeds the VMEM budget of {budget_bytes} bytes; shrink the model "
            f"or tile the sequence dimension.")
    multi = [c for c in fitting if n_seq // c >= 2]
    return max(multi) if multi else max(fitting)


# ----------------------------- pallas_call wrapper --------------------------- #
def _batched_attention(x2, wqkv_bf16, wo_bf16, *, heads, seq_len):
    """x2: (n_seq * seq_len, D) float32, sequences stored contiguously."""
    rows, d = x2.shape
    n_seq = rows // seq_len

    vmem_cap = _vmem_capacity_bytes()
    # <= 48 MiB on v7x (64 MiB physical), 64 MiB on v5e/v6e (128 MiB physical).
    vmem_limit = int(min((vmem_cap * 3) // 4, 64 * 1024 * 1024))
    weight_bytes = (d * 3 * d + d * d) * 2            # resident bf16 weights (single-buffered)
    budget = max(vmem_limit - weight_bytes - (2 << 20), 2 << 20)

    seq_blk = _choose_seq_block(n_seq, seq_len, d, heads, budget)
    blk_rows = seq_blk * seq_len
    grid = (n_seq // seq_blk,)

    x2_bf16 = x2.astype(jnp.bfloat16)                 # halves activation HBM->VMEM DMA

    # TODO(synk): when d < 128 the output stores are masked (lane width d); a
    # lane-dense (rows*d/128, 128) presentation of x/out would remove that, but
    # it is a no-op at real model widths (d a multiple of 128), so it is skipped.
    kernel = functools.partial(_attn_kernel, heads=heads, seq_len=seq_len)
    return pl.pallas_call(
        kernel,
        out_shape=jax.ShapeDtypeStruct((rows, d), jnp.float32),
        grid_spec=pltpu.PrefetchScalarGridSpec(
            num_scalar_prefetch=0,
            grid=grid,
            in_specs=[
                pl.BlockSpec((blk_rows, d), lambda i: (i, 0)),      # block of whole sequences
                # Whole weights resident in VMEM, single-buffered (no double-buffer
                # allocation for a constant-index block).
                pl.BlockSpec(memory_space=pltpu.MemorySpace.VMEM),  # fused Wqkv (D, 3D) bf16
                pl.BlockSpec(memory_space=pltpu.MemorySpace.VMEM),  # Wo (D, D) bf16
            ],
            out_specs=pl.BlockSpec((blk_rows, d), lambda i: (i, 0)),
            scratch_shapes=[pltpu.VMEM((blk_rows, d), jnp.bfloat16)],   # ctx accumulator
        ),
        compiler_params=pltpu.CompilerParams(
            dimension_semantics=("parallel",),
            vmem_limit_bytes=vmem_limit,
        ),
    )(x2_bf16, wqkv_bf16, wo_bf16)


# ------------------------------ Module wrapper ------------------------------- #
class AttentionPallas:
    """JAX/Pallas equivalent of the PyTorch Attention module (eval mode)."""

    def __init__(self, embed_dim, heads, dropout, num_space_patches,
                 num_time_patches, attn_type, key):
        assert embed_dim % heads == 0
        assert attn_type in ("space", "time")
        self.embed_dim = embed_dim
        self.heads = heads
        self.num_space_patches = num_space_patches
        self.num_time_patches = num_time_patches
        self.attn_type = attn_type
        # TODO(synk): dropout is identity here (inference / eval-mode semantics).

        # Deterministic init mimicking nn.Linear uniform(-1/sqrt(in), 1/sqrt(in)).
        bound = 1.0 / np.sqrt(embed_dim)
        ks = jax.random.split(key, 4)
        # Stored pre-transposed (in, out) so the kernel computes x @ W == x @ W_torch.T.
        self.wq = jax.random.uniform(ks[0], (embed_dim, embed_dim), jnp.float32, -bound, bound)
        self.wk = jax.random.uniform(ks[1], (embed_dim, embed_dim), jnp.float32, -bound, bound)
        self.wv = jax.random.uniform(ks[2], (embed_dim, embed_dim), jnp.float32, -bound, bound)
        self.wo = jax.random.uniform(ks[3], (embed_dim, embed_dim), jnp.float32, -bound, bound)
        # Fused QKV weight + output weight in bf16 for the kernel's MXU matmuls.
        self.wqkv_bf16 = jnp.concatenate([self.wq, self.wk, self.wv], axis=1).astype(jnp.bfloat16)
        self.wo_bf16 = self.wo.astype(jnp.bfloat16)

    def __call__(self, x):
        b, tn, d = x.shape
        t, n = self.num_time_patches, self.num_space_patches
        assert tn == t * n and d == self.embed_dim
        if self.attn_type == "space":
            # (b, t*n, d) rows are already ordered (b, t, n) -> sequences of length n.
            x2 = x.reshape(b * t * n, d)
            out = _batched_attention(x2, self.wqkv_bf16, self.wo_bf16,
                                     heads=self.heads, seq_len=n)
            return out.reshape(b, t * n, d)
        else:  # time
            x4 = x.reshape(b, t, n, d)
            x2 = jnp.transpose(x4, (0, 2, 1, 3)).reshape(b * n * t, d)
            out = _batched_attention(x2, self.wqkv_bf16, self.wo_bf16,
                                     heads=self.heads, seq_len=t)
            out = out.reshape(b, n, t, d)
            return jnp.transpose(out, (0, 2, 1, 3)).reshape(b, t * n, d)


# ----------------------------- Pure-JAX reference ---------------------------- #
def _ref_attn(x, wq, wk, wv, wo, heads):
    N, L, D = x.shape
    hd = D // heads
    q = (x @ wq).reshape(N, L, heads, hd)
    k = (x @ wk).reshape(N, L, heads, hd)
    v = (x @ wv).reshape(N, L, heads, hd)
    energy = jnp.einsum("nqhd,nkhd->nhqk", q, k) / (D ** 0.5)
    attn = jax.nn.softmax(energy, axis=3)
    out = jnp.einsum("nhql,nlhd->nqhd", attn, v).reshape(N, L, D)
    return out @ wo


def _ref_module(mod, x):
    b, tn, d = x.shape
    t, n = mod.num_time_patches, mod.num_space_patches
    x4 = x.reshape(b, t, n, d)
    if mod.attn_type == "space":
        xs = x4.reshape(b * t, n, d)
        o = _ref_attn(xs, mod.wq, mod.wk, mod.wv, mod.wo, mod.heads)
        return o.reshape(b, t * n, d)
    xt = jnp.transpose(x4, (0, 2, 1, 3)).reshape(b * n, t, d)
    o = _ref_attn(xt, mod.wq, mod.wk, mod.wv, mod.wo, mod.heads)
    return jnp.transpose(o.reshape(b, n, t, d), (0, 2, 1, 3)).reshape(b, t * n, d)


# ------------------------------------ Main ----------------------------------- #
if __name__ == "__main__":
    key = jax.random.PRNGKey(0)
    k_x, k_params = jax.random.split(key)

    batch = 2
    embed_dim = 32
    heads = 4
    num_time_patches = 4
    num_space_patches = 8
    seq = num_time_patches * num_space_patches  # 32

    x = jax.random.normal(k_x, (batch, seq, embed_dim), dtype=jnp.float32)

    ok = True
    for attn_type in ("space", "time"):
        mod = AttentionPallas(embed_dim, heads, dropout=0.0,
                              num_space_patches=num_space_patches,
                              num_time_patches=num_time_patches,
                              attn_type=attn_type, key=k_params)
        out = jax.block_until_ready(mod(x))
        ref = jax.block_until_ready(_ref_module(mod, x))
        if out.shape != (batch, seq, embed_dim):
            ok = False
            print(f"{attn_type}: bad shape {out.shape}")
        # Tolerance accommodates bf16 MXU operands (f32 accumulation) and the
        # approx reciprocal in the softmax denominator, vs. the f32 reference.
        err = float(np.max(np.abs(np.asarray(out) - np.asarray(ref))))
        if not np.allclose(np.asarray(out), np.asarray(ref), atol=3e-2, rtol=3e-2):
            ok = False
            print(f"{attn_type}: max abs err {err}")

    if ok:
        print("KERNEL_OK")
</pallas_src>

<mosaic_0001>
module attributes {stable_mosaic.version = 11 : i64} {
  func.func @_attn_kernel(%arg0: i32, %arg1: memref<32x32xbf16, #tpu.memory_space<vmem>>, %arg2: memref<32x96xbf16, #tpu.memory_space<vmem>>, %arg3: memref<32x32xbf16, #tpu.memory_space<vmem>>, %arg4: memref<32x32xf32, #tpu.memory_space<vmem>>, %arg5: memref<32x32xbf16, #tpu.memory_space<vmem>>) attributes {dimension_semantics = [#tpu.dimension_semantics<parallel>], iteration_bounds = array<i64: 2>, scalar_prefetch = 0 : i64, scratch_operands = 1 : i64, tpu.core_type = #tpu.core_type<tc>, window_params = [{transform_indices = @transform_0, window_bounds = array<i64: 32, 32>}, {pipeline_mode = #tpu.pipeline_mode<synchronous>, transform_indices = @transform_1, window_bounds = array<i64: 32, 96>}, {pipeline_mode = #tpu.pipeline_mode<synchronous>, transform_indices = @transform_2, window_bounds = array<i64: 32, 32>}, {transform_indices = @transform_3, window_bounds = array<i64: 32, 32>}]} {
    %c0 = arith.constant 0 : index
    %c0_0 = arith.constant 0 : index
    %0 = vector.load %arg1[%c0, %c0_0] : memref<32x32xbf16, #tpu.memory_space<vmem>>, vector<32x32xbf16>
    %c0_1 = arith.constant 0 : index
    %c0_2 = arith.constant 0 : index
    %1 = vector.load %arg2[%c0_1, %c0_2] : memref<32x96xbf16, #tpu.memory_space<vmem>>, vector<32x96xbf16>
    %c0_3 = arith.constant 0 : index
    %c0_4 = arith.constant 0 : index
    %2 = vector.load %arg3[%c0_3, %c0_4] : memref<32x32xbf16, #tpu.memory_space<vmem>>, vector<32x32xbf16>
    %cst = arith.constant dense<0.000000e+00> : vector<32x96xf32>
    %3 = tpu.matmul %0, %1, %cst {dimension_numbers = #tpu.dot_dimension_numbers<[1], [0], [0], [1], [0, 0, 1, 1], [], []>} : vector<32x32xbf16>, vector<32x96xbf16>, vector<32x96xf32> -> vector<32x96xf32>
    %4 = vector.extract_strided_slice %3 {offsets = [0, 0], sizes = [32, 8], strides = [1, 1]} : vector<32x96xf32> to vector<32x8xf32>
    %5 = arith.truncf %4 : vector<32x8xf32> to vector<32x8xbf16>
    %6 = vector.shape_cast %5 : vector<32x8xbf16> to vector<4x8x8xbf16>
    %7 = vector.extract_strided_slice %3 {offsets = [0, 32], sizes = [32, 8], strides = [1, 1]} : vector<32x96xf32> to vector<32x8xf32>
    %8 = arith.truncf %7 : vector<32x8xf32> to vector<32x8xbf16>
    %9 = vector.shape_cast %8 : vector<32x8xbf16> to vector<4x8x8xbf16>
    %10 = vector.extract_strided_slice %3 {offsets = [0, 64], sizes = [32, 8], strides = [1, 1]} : vector<32x96xf32> to vector<32x8xf32>
    %11 = arith.truncf %10 : vector<32x8xf32> to vector<32x8xbf16>
    %12 = vector.shape_cast %11 : vector<32x8xbf16> to vector<4x8x8xbf16>
    %cst_5 = arith.constant dense<0.000000e+00> : vector<4x8x8xf32>
    %13 = tpu.matmul %6, %9, %cst_5 {dimension_numbers = #tpu.dot_dimension_numbers<[2], [2], [1], [1], [0, 0, 0, 1, 1, 1], [0], [0]>} : vector<4x8x8xbf16>, vector<4x8x8xbf16>, vector<4x8x8xf32> -> vector<4x8x8xf32>
    %cst_6 = arith.constant 0.176776692 : f32
    %14 = vector.broadcast %cst_6 : f32 to vector<4x8x8xf32>
    %15 = arith.mulf %13, %14 : vector<4x8x8xf32>
    %cst_7 = arith.constant dense<0xFF800000> : vector<4x8xf32>
    %16 = vector.multi_reduction <maximumf>, %15, %cst_7 [2] : vector<4x8x8xf32> to vector<4x8xf32>
    %17 = vector.shape_cast %16 : vector<4x8xf32> to vector<4x8x1xf32>
    %18 = vector.broadcast %17 : vector<4x8x1xf32> to vector<4x8x8xf32>
    %19 = arith.subf %15, %18 : vector<4x8x8xf32>
    %20 = math.exp %19 : vector<4x8x8xf32>
    %cst_8 = arith.constant dense<0.000000e+00> : vector<4x8xf32>
    %21 = vector.multi_reduction <add>, %20, %cst_8 [2] : vector<4x8x8xf32> to vector<4x8xf32>
    %22 = vector.shape_cast %21 : vector<4x8xf32> to vector<4x8x1xf32>
    %23 = arith.truncf %20 : vector<4x8x8xf32> to vector<4x8x8xbf16>
    %cst_9 = arith.constant dense<0.000000e+00> : vector<4x8x8xf32>
    %24 = tpu.matmul %23, %12, %cst_9 {dimension_numbers = #tpu.dot_dimension_numbers<[2], [1], [1], [2], [0, 0, 0, 1, 1, 2], [0], [0]>} : vector<4x8x8xbf16>, vector<4x8x8xbf16>, vector<4x8x8xf32> -> vector<4x8x8xf32>
    %25 = tpu.reciprocal %22 {approx = true} : vector<4x8x1xf32> -> vector<4x8x1xf32>
    %26 = vector.broadcast %25 : vector<4x8x1xf32> to vector<4x8x8xf32>
    %27 = arith.mulf %24, %26 : vector<4x8x8xf32>
    %28 = vector.shape_cast %27 : vector<4x8x8xf32> to vector<32x8xf32>
    %29 = arith.truncf %28 : vector<32x8xf32> to vector<32x8xbf16>
    %c0_10 = arith.constant 0 : index
    %c0_11 = arith.constant 0 : index
    %30 = vector.load %arg5[%c0_10, %c0_11] : memref<32x32xbf16, #tpu.memory_space<vmem>>, vector<32x8xbf16>
    tpu.vector_store %arg5[%c0_10, %c0_11], %29 {strides = array<i32>} : memref<32x32xbf16, #tpu.memory_space<vmem>>, vector<32x8xbf16>,
    %31 = vector.extract_strided_slice %3 {offsets = [0, 8], sizes = [32, 8], strides = [1, 1]} : vector<32x96xf32> to vector<32x8xf32>
    %32 = arith.truncf %31 : vector<32x8xf32> to vector<32x8xbf16>
    %33 = vector.shape_cast %32 : vector<32x8xbf16> to vector<4x8x8xbf16>
    %34 = vector.extract_strided_slice %3 {offsets = [0, 40], sizes = [32, 8], strides = [1, 1]} : vector<32x96xf32> to vector<32x8xf32>
    %35 = arith.truncf %34 : vector<32x8xf32> to vector<32x8xbf16>
    %36 = vector.shape_cast %35 : vector<32x8xbf16> to vector<4x8x8xbf16>
    %37 = vector.extract_strided_slice %3 {offsets = [0, 72], sizes = [32, 8], strides = [1, 1]} : vector<32x96xf32> to vector<32x8xf32>
    %38 = arith.truncf %37 : vector<32x8xf32> to vector<32x8xbf16>
    %39 = vector.shape_cast %38 : vector<32x8xbf16> to vector<4x8x8xbf16>
    %cst_12 = arith.constant dense<0.000000e+00> : vector<4x8x8xf32>
    %40 = tpu.matmul %33, %36, %cst_12 {dimension_numbers = #tpu.dot_dimension_numbers<[2], [2], [1], [1], [0, 0, 0, 1, 1, 1], [0], [0]>} : vector<4x8x8xbf16>, vector<4x8x8xbf16>, vector<4x8x8xf32> -> vector<4x8x8xf32>
    %cst_13 = arith.constant 0.176776692 : f32
    %41 = vector.broadcast %cst_13 : f32 to vector<4x8x8xf32>
    %42 = arith.mulf %40, %41 : vector<4x8x8xf32>
    %cst_14 = arith.constant dense<0xFF800000> : vector<4x8xf32>
    %43 = vector.multi_reduction <maximumf>, %42, %cst_14 [2] : vector<4x8x8xf32> to vector<4x8xf32>
    %44 = vector.shape_cast %43 : vector<4x8xf32> to vector<4x8x1xf32>
    %45 = vector.broadcast %44 : vector<4x8x1xf32> to vector<4x8x8xf32>
    %46 = arith.subf %42, %45 : vector<4x8x8xf32>
    %47 = math.exp %46 : vector<4x8x8xf32>
    %cst_15 = arith.constant dense<0.000000e+00> : vector<4x8xf32>
    %48 = vector.multi_reduction <add>, %47, %cst_15 [2] : vector<4x8x8xf32> to vector<4x8xf32>
    %49 = vector.shape_cast %48 : vector<4x8xf32> to vector<4x8x1xf32>
    %50 = arith.truncf %47 : vector<4x8x8xf32> to vector<4x8x8xbf16>
    %cst_16 = arith.constant dense<0.000000e+00> : vector<4x8x8xf32>
    %51 = tpu.matmul %50, %39, %cst_16 {dimension_numbers = #tpu.dot_dimension_numbers<[2], [1], [1], [2], [0, 0, 0, 1, 1, 2], [0], [0]>} : vector<4x8x8xbf16>, vector<4x8x8xbf16>, vector<4x8x8xf32> -> vector<4x8x8xf32>
    %52 = tpu.reciprocal %49 {approx = true} : vector<4x8x1xf32> -> vector<4x8x1xf32>
    %53 = vector.broadcast %52 : vector<4x8x1xf32> to vector<4x8x8xf32>
    %54 = arith.mulf %51, %53 : vector<4x8x8xf32>
    %55 = vector.shape_cast %54 : vector<4x8x8xf32> to vector<32x8xf32>
    %56 = arith.truncf %55 : vector<32x8xf32> to vector<32x8xbf16>
    %c0_17 = arith.constant 0 : index
    %c8 = arith.constant 8 : index
    %57 = vector.load %arg5[%c0_17, %c8] : memref<32x32xbf16, #tpu.memory_space<vmem>>, vector<32x8xbf16>
    tpu.vector_store %arg5[%c0_17, %c8], %56 {strides = array<i32>} : memref<32x32xbf16, #tpu.memory_space<vmem>>, vector<32x8xbf16>,
    %58 = vector.extract_strided_slice %3 {offsets = [0, 16], sizes = [32, 8], strides = [1, 1]} : vector<32x96xf32> to vector<32x8xf32>
    %59 = arith.truncf %58 : vector<32x8xf32> to vector<32x8xbf16>
    %60 = vector.shape_cast %59 : vector<32x8xbf16> to vector<4x8x8xbf16>
    %61 = vector.extract_strided_slice %3 {offsets = [0, 48], sizes = [32, 8], strides = [1, 1]} : vector<32x96xf32> to vector<32x8xf32>
    %62 = arith.truncf %61 : vector<32x8xf32> to vector<32x8xbf16>
    %63 = vector.shape_cast %62 : vector<32x8xbf16> to vector<4x8x8xbf16>
    %64 = vector.extract_strided_slice %3 {offsets = [0, 80], sizes = [32, 8], strides = [1, 1]} : vector<32x96xf32> to vector<32x8xf32>
    %65 = arith.truncf %64 : vector<32x8xf32> to vector<32x8xbf16>
    %66 = vector.shape_cast %65 : vector<32x8xbf16> to vector<4x8x8xbf16>
    %cst_18 = arith.constant dense<0.000000e+00> : vector<4x8x8xf32>
    %67 = tpu.matmul %60, %63, %cst_18 {dimension_numbers = #tpu.dot_dimension_numbers<[2], [2], [1], [1], [0, 0, 0, 1, 1, 1], [0], [0]>} : vector<4x8x8xbf16>, vector<4x8x8xbf16>, vector<4x8x8xf32> -> vector<4x8x8xf32>
    %cst_19 = arith.constant 0.176776692 : f32
    %68 = vector.broadcast %cst_19 : f32 to vector<4x8x8xf32>
    %69 = arith.mulf %67, %68 : vector<4x8x8xf32>
    %cst_20 = arith.constant dense<0xFF800000> : vector<4x8xf32>
    %70 = vector.multi_reduction <maximumf>, %69, %cst_20 [2] : vector<4x8x8xf32> to vector<4x8xf32>
    %71 = vector.shape_cast %70 : vector<4x8xf32> to vector<4x8x1xf32>
    %72 = vector.broadcast %71 : vector<4x8x1xf32> to vector<4x8x8xf32>
    %73 = arith.subf %69, %72 : vector<4x8x8xf32>
    %74 = math.exp %73 : vector<4x8x8xf32>
    %cst_21 = arith.constant dense<0.000000e+00> : vector<4x8xf32>
    %75 = vector.multi_reduction <add>, %74, %cst_21 [2] : vector<4x8x8xf32> to vector<4x8xf32>
    %76 = vector.shape_cast %75 : vector<4x8xf32> to vector<4x8x1xf32>
    %77 = arith.truncf %74 : vector<4x8x8xf32> to vector<4x8x8xbf16>
    %cst_22 = arith.constant dense<0.000000e+00> : vector<4x8x8xf32>
    %78 = tpu.matmul %77, %66, %cst_22 {dimension_numbers = #tpu.dot_dimension_numbers<[2], [1], [1], [2], [0, 0, 0, 1, 1, 2], [0], [0]>} : vector<4x8x8xbf16>, vector<4x8x8xbf16>, vector<4x8x8xf32> -> vector<4x8x8xf32>
    %79 = tpu.reciprocal %76 {approx = true} : vector<4x8x1xf32> -> vector<4x8x1xf32>
    %80 = vector.broadcast %79 : vector<4x8x1xf32> to vector<4x8x8xf32>
    %81 = arith.mulf %78, %80 : vector<4x8x8xf32>
    %82 = vector.shape_cast %81 : vector<4x8x8xf32> to vector<32x8xf32>
    %83 = arith.truncf %82 : vector<32x8xf32> to vector<32x8xbf16>
    %c0_23 = arith.constant 0 : index
    %c16 = arith.constant 16 : index
    %84 = vector.load %arg5[%c0_23, %c16] : memref<32x32xbf16, #tpu.memory_space<vmem>>, vector<32x8xbf16>
    tpu.vector_store %arg5[%c0_23, %c16], %83 {strides = array<i32>} : memref<32x32xbf16, #tpu.memory_space<vmem>>, vector<32x8xbf16>,
    %85 = vector.extract_strided_slice %3 {offsets = [0, 24], sizes = [32, 8], strides = [1, 1]} : vector<32x96xf32> to vector<32x8xf32>
    %86 = arith.truncf %85 : vector<32x8xf32> to vector<32x8xbf16>
    %87 = vector.shape_cast %86 : vector<32x8xbf16> to vector<4x8x8xbf16>
    %88 = vector.extract_strided_slice %3 {offsets = [0, 56], sizes = [32, 8], strides = [1, 1]} : vector<32x96xf32> to vector<32x8xf32>
    %89 = arith.truncf %88 : vector<32x8xf32> to vector<32x8xbf16>
    %90 = vector.shape_cast %89 : vector<32x8xbf16> to vector<4x8x8xbf16>
    %91 = vector.extract_strided_slice %3 {offsets = [0, 88], sizes = [32, 8], strides = [1, 1]} : vector<32x96xf32> to vector<32x8xf32>
    %92 = arith.truncf %91 : vector<32x8xf32> to vector<32x8xbf16>
    %93 = vector.shape_cast %92 : vector<32x8xbf16> to vector<4x8x8xbf16>
    %cst_24 = arith.constant dense<0.000000e+00> : vector<4x8x8xf32>
    %94 = tpu.matmul %87, %90, %cst_24 {dimension_numbers = #tpu.dot_dimension_numbers<[2], [2], [1], [1], [0, 0, 0, 1, 1, 1], [0], [0]>} : vector<4x8x8xbf16>, vector<4x8x8xbf16>, vector<4x8x8xf32> -> vector<4x8x8xf32>
    %cst_25 = arith.constant 0.176776692 : f32
    %95 = vector.broadcast %cst_25 : f32 to vector<4x8x8xf32>
    %96 = arith.mulf %94, %95 : vector<4x8x8xf32>
    %cst_26 = arith.constant dense<0xFF800000> : vector<4x8xf32>
    %97 = vector.multi_reduction <maximumf>, %96, %cst_26 [2] : vector<4x8x8xf32> to vector<4x8xf32>
    %98 = vector.shape_cast %97 : vector<4x8xf32> to vector<4x8x1xf32>
    %99 = vector.broadcast %98 : vector<4x8x1xf32> to vector<4x8x8xf32>
    %100 = arith.subf %96, %99 : vector<4x8x8xf32>
    %101 = math.exp %100 : vector<4x8x8xf32>
    %cst_27 = arith.constant dense<0.000000e+00> : vector<4x8xf32>
    %102 = vector.multi_reduction <add>, %101, %cst_27 [2] : vector<4x8x8xf32> to vector<4x8xf32>
    %103 = vector.shape_cast %102 : vector<4x8xf32> to vector<4x8x1xf32>
    %104 = arith.truncf %101 : vector<4x8x8xf32> to vector<4x8x8xbf16>
    %cst_28 = arith.constant dense<0.000000e+00> : vector<4x8x8xf32>
    %105 = tpu.matmul %104, %93, %cst_28 {dimension_numbers = #tpu.dot_dimension_numbers<[2], [1], [1], [2], [0, 0, 0, 1, 1, 2], [0], [0]>} : vector<4x8x8xbf16>, vector<4x8x8xbf16>, vector<4x8x8xf32> -> vector<4x8x8xf32>
    %106 = tpu.reciprocal %103 {approx = true} : vector<4x8x1xf32> -> vector<4x8x1xf32>
    %107 = vector.broadcast %106 : vector<4x8x1xf32> to vector<4x8x8xf32>
    %108 = arith.mulf %105, %107 : vector<4x8x8xf32>
    %109 = vector.shape_cast %108 : vector<4x8x8xf32> to vector<32x8xf32>
    %110 = arith.truncf %109 : vector<32x8xf32> to vector<32x8xbf16>
    %c0_29 = arith.constant 0 : index
    %c24 = arith.constant 24 : index
    %111 = vector.load %arg5[%c0_29, %c24] : memref<32x32xbf16, #tpu.memory_space<vmem>>, vector<32x8xbf16>
    tpu.vector_store %arg5[%c0_29, %c24], %110 {strides = array<i32>} : memref<32x32xbf16, #tpu.memory_space<vmem>>, vector<32x8xbf16>,
    %c0_30 = arith.constant 0 : index
    %c0_31 = arith.constant 0 : index
    %112 = vector.load %arg5[%c0_30, %c0_31] : memref<32x32xbf16, #tpu.memory_space<vmem>>, vector<32x32xbf16>
    %cst_32 = arith.constant dense<0.000000e+00> : vector<32x32xf32>
    %113 = tpu.matmul %112, %2, %cst_32 {dimension_numbers = #tpu.dot_dimension_numbers<[1], [0], [0], [1], [0, 0, 1, 1], [], []>} : vector<32x32xbf16>, vector<32x32xbf16>, vector<32x32xf32> -> vector<32x32xf32>
    %c0_33 = arith.constant 0 : index
    %c0_34 = arith.constant 0 : index
    %114 = vector.load %arg4[%c0_33, %c0_34] : memref<32x32xf32, #tpu.memory_space<vmem>>, vector<32x32xf32>
    tpu.vector_store %arg4[%c0_33, %c0_34], %113 {strides = array<i32>} : memref<32x32xf32, #tpu.memory_space<vmem>>, vector<32x32xf32>,
    return
  }
  func.func @transform_0(%arg0: i32) -> (i32, i32) {
    %c0_i32 = arith.constant 0 : i32
    %c0_i32_0 = arith.constant 0 : i32
    return %arg0, %c0_i32 : i32, i32
  }
  func.func @transform_1(%arg0: i32) -> (i32, i32) {
    %c0_i32 = arith.constant 0 : i32
    %c0_i32_0 = arith.constant 0 : i32
    %c0_i32_1 = arith.constant 0 : i32
    return %c0_i32, %c0_i32_0 : i32, i32
  }
  func.func @transform_2(%arg0: i32) -> (i32, i32) {
    %c0_i32 = arith.constant 0 : i32
    %c0_i32_0 = arith.constant 0 : i32
    %c0_i32_1 = arith.constant 0 : i32
    return %c0_i32, %c0_i32_0 : i32, i32
  }
  func.func @transform_3(%arg0: i32) -> (i32, i32) {
    %c0_i32 = arith.constant 0 : i32
    %c0_i32_0 = arith.constant 0 : i32
    return %arg0, %c0_i32 : i32, i32
  }
}

</mosaic_0001>

<llo_original>
// kernel: tpu_custom_call.1
$region0: #{tpu_custom_call.1}
  #allocation0 [shape = 'u32[]', space=smem, size = 0x4, offset = 0x4, fixed_abs, tag = 'smem constant byte address 0x4 - core index']
  #allocation1 [shape = 'u32[72,128]{1,0:T(1,128)}', space=vmem, size = 0x9000, scoped, tag = 'internal scratch']
  #allocation2 [shape = 'bf16[32,32]{1,0:T(8,128)(2,1)}', space=vmem, size = 0x2000, scoped, tag = 'scratch operand']
  %s0 = inlined_call_operand.vmem [shape: bf16[64,32], index: 0, kind: input, shape index: {}]
  %s1 = inlined_call_operand.vmem [shape: bf16[32,96], index: 1, kind: input, shape index: {}]
  %s2 = inlined_call_operand.vmem [shape: bf16[32,32], index: 2, kind: input, shape index: {}]
  %s3 = inlined_call_operand.vmem [shape: f32[64,32], index: 3, kind: output, shape index: {}]
  %s4 = sld [smem:[#allocation0]]
  $region45: #{tpu_custom_call.1} parent=0
    _
  %s6 = ssub.s32 1, %s4
  %s7 = scalar_select 0, %s6, %s4
  loop: start=0, step=1, limit=4
  $region2: #{tpu_custom_call.1} parent=0 // loop_pre_header
    _
  $region3: #{tpu_custom_call.1} parent=0 // loop_header
    %s9 = sphi 0, %s13
    %p10 = scmp.ge.s32.totalorder %s9, 4
    %s19 = sphi 0, %s21
    %s22 = sphi 0, %s19
    %s23 = sphi 0, %s22
    %s39 = sphi 0, %s23
    %s43 = sphi 0, %s43
    %s45 = sphi 0, %s43
    %s46 = sphi 0, %s45
    %s60 = sphi 0, %s46
    %s64 = sphi 0, %s64
    %s66 = sphi 0, %s64
    %s67 = sphi 0, %s66
    %s81 = sphi 0, %s67
    %s87 = sphi 0, %s89
    %s90 = sphi 0, %s87
    %s91 = sphi 0, %s90
    %s107 = sphi 0, %s91
  $region4: #{tpu_custom_call.1} parent=0 // loop_header_branch
    %12 = sbr.rel (%p10) target = $region8
  $region5: #{tpu_custom_call.1} parent=0 // loop_body
    %s14 = ssub.s32 %s9, 1
    %s15 = ssub.s32 %s9, 2
    %s16 = sadd.s32 %s9, 1
    %s17 = ssub.s32 %s9, %s16
    %p18 = scmp.eq.s32.totalorder %s17, 0
    %s20 = sadd.s32 %s19, 1
    %s21 = scalar_select %p18, %s19, %s20
    %p24 = pneg %p18
    %p25 = scmp.eq.s32.totalorder %s9, 1
    %p26 = por %p24, %p25
    %p27 = scmp.ne.s32.totalorder %s19, %s22
    %p28 = scmp.eq.s32.totalorder %s9, 0
    %p29 = por %p27, %p28
    %p30 = scmp.ne.s32.totalorder %s19, %s22
    %p31 = scmp.eq.s32.totalorder %s14, 1
    %p32 = por %p30, %p31
    %p33 = scmp.ne.s32.totalorder %s22, %s23
    %p34 = scmp.eq.s32.totalorder %s14, 0
    %p35 = por %p33, %p34
    %p36 = scmp.ne.s32.totalorder %s22, %s23
    %p37 = scmp.eq.s32.totalorder %s15, 1
    %p38 = por %p36, %p37
    %p40 = scmp.ne.s32.totalorder %s23, %s39
    %p41 = scmp.eq.s32.totalorder %s15, 0
    %p42 = por %p40, %p41
    %s44 = sadd.s32 %s43, 1
    %p47 = scmp.eq.s32.totalorder %s9, 1
    %p48 = scmp.ne.s32.totalorder %s43, %s45
    %p49 = scmp.eq.s32.totalorder %s9, 0
    %p50 = por %p48, %p49
    %p51 = scmp.ne.s32.totalorder %s43, %s45
    %p52 = scmp.eq.s32.totalorder %s14, 1
    %p53 = por %p51, %p52
    %p54 = scmp.ne.s32.totalorder %s45, %s46
    %p55 = scmp.eq.s32.totalorder %s14, 0
    %p56 = por %p54, %p55
    %p57 = scmp.ne.s32.totalorder %s45, %s46
    %p58 = scmp.eq.s32.totalorder %s15, 1
    %p59 = por %p57, %p58
    %p61 = scmp.ne.s32.totalorder %s46, %s60
    %p62 = scmp.eq.s32.totalorder %s15, 0
    %p63 = por %p61, %p62
    %s65 = sadd.s32 %s64, 1
    %p68 = scmp.eq.s32.totalorder %s9, 1
    %p69 = scmp.ne.s32.totalorder %s64, %s66
    %p70 = scmp.eq.s32.totalorder %s9, 0
    %p71 = por %p69, %p70
    %p72 = scmp.ne.s32.totalorder %s64, %s66
    %p73 = scmp.eq.s32.totalorder %s14, 1
    %p74 = por %p72, %p73
    %p75 = scmp.ne.s32.totalorder %s66, %s67
    %p76 = scmp.eq.s32.totalorder %s14, 0
    %p77 = por %p75, %p76
    %p78 = scmp.ne.s32.totalorder %s66, %s67
    %p79 = scmp.eq.s32.totalorder %s15, 1
    %p80 = por %p78, %p79
    %p82 = scmp.ne.s32.totalorder %s67, %s81
    %p83 = scmp.eq.s32.totalorder %s15, 0
    %p84 = por %p82, %p83
    %s85 = ssub.s32 %s9, %s16
    %p86 = scmp.eq.s32.totalorder %s85, 0
    %s88 = sadd.s32 %s87, 1
    %s89 = scalar_select %p86, %s87, %s88
    %p92 = pneg %p86
    %p93 = scmp.eq.s32.totalorder %s9, 1
    %p94 = por %p92, %p93
    %p95 = scmp.ne.s32.totalorder %s87, %s90
    %p96 = scmp.eq.s32.totalorder %s9, 0
    %p97 = por %p95, %p96
    %p98 = scmp.ne.s32.totalorder %s87, %s90
    %p99 = scmp.eq.s32.totalorder %s14, 1
    %p100 = por %p98, %p99
    %p101 = scmp.ne.s32.totalorder %s90, %s91
    %p102 = scmp.eq.s32.totalorder %s14, 0
    %p103 = por %p101, %p102
    %p104 = scmp.ne.s32.totalorder %s90, %s91
    %p105 = scmp.eq.s32.totalorder %s15, 1
    %p106 = por %p104, %p105
    %p108 = scmp.ne.s32.totalorder %s91, %s107
    %p109 = scmp.eq.s32.totalorder %s15, 0
    %p110 = por %p108, %p109
    %p111 = scmp.le.s32.totalorder 1, %s9
    %p112 = scmp.lt.s32.totalorder %s9, 3
    %p113 = pnand %p111, %p112
    %p114 = pneg %p113
    // Predicated region
    $region9: #{tpu_custom_call.1} parent=5 // pred_check
      _
    $region10: #{tpu_custom_call.1} parent=5 // pred_check_branch
      %116 = sbr.rel (%p113) target = $region12
    $region11: #{tpu_custom_call.1} parent=5 // pred_region
      %s117 = ssub.s32 %s9, 1
      // Predicated region
      $region13: #{tpu_custom_call.1} parent=11 // pred_check
        %p118 = pneg %p56
      $region14: #{tpu_custom_call.1} parent=11 // pred_check_branch
        %120 = sbr.rel (%p118) target = $region16
      $region15: #{tpu_custom_call.1} parent=11 // pred_region
        _
      $region16: #{tpu_custom_call.1} parent=11 // pred_fallthru
        _
      // Predicated region
      $region17: #{tpu_custom_call.1} parent=11 // pred_check
        %p121 = pneg %p77
      $region18: #{tpu_custom_call.1} parent=11 // pred_check_branch
        %123 = sbr.rel (%p121) target = $region20
      $region19: #{tpu_custom_call.1} parent=11 // pred_region
        _
      $region20: #{tpu_custom_call.1} parent=11 // pred_fallthru
        _
    $region12: #{tpu_custom_call.1} parent=5 // pred_fallthru
      _
    %p124 = scmp.lt.s32.totalorder %s9, 2
    // Predicated region
    $region21: #{tpu_custom_call.1} parent=5 // pred_check
      %p125 = pneg %p124
    $region22: #{tpu_custom_call.1} parent=5 // pred_check_branch
      %127 = sbr.rel (%p125) target = $region24
    $region23: #{tpu_custom_call.1} parent=5 // pred_region
      // Predicated region
      $region25: #{tpu_custom_call.1} parent=23 // pred_check
        %p128 = pneg %p29
      $region26: #{tpu_custom_call.1} parent=23 // pred_check_branch
        %130 = sbr.rel (%p128) target = $region28
      $region27: #{tpu_custom_call.1} parent=23 // pred_region
        %s131 = smul.u32 4, %s9
        %p132 = scmp.lt.s32.totalorder %s131, 7
        %s133 = scalar_select %p132, %s131, 7
        %s134 = smul.addr %s133, 4
        %s135 = scalar_lea.vmem %s0, %s134
        %s136 = smul.u32 4, %s9
      $region28: #{tpu_custom_call.1} parent=23 // pred_fallthru
        _
    $region24: #{tpu_custom_call.1} parent=5 // pred_fallthru
      _
    %p137 = scmp.le.s32.totalorder 1, %s9
    %p138 = scmp.lt.s32.totalorder %s9, 3
    %p139 = pnand %p137, %p138
    %p140 = pneg %p139
    // Predicated region
    $region29: #{tpu_custom_call.1} parent=5 // pred_check
      _
    $region30: #{tpu_custom_call.1} parent=5 // pred_check_branch
      %142 = sbr.rel (%p139) target = $region32
    $region31: #{tpu_custom_call.1} parent=5 // pred_region
      %s143 = ssub.s32 %s9, 1
      %s144 = smul.u32 4, %s14
      %p145 = scmp.lt.s32.totalorder %s144, 7
      %s146 = scalar_select %p145, %s144, 7
      %s147 = smul.addr %s146, 4
      %s148 = scalar_lea.vmem %s0, %s147
      %p149 = pneg %p35
      %p150 = pneg %p32
      %p151 = pneg %p56
      %p152 = pneg %p53
      %p153 = pneg %p77
      %p154 = pneg %p74
      %p155 = pneg %p103
      %p156 = pneg %p100
      %s157 = smul.u32 4, %s14
      %p158 = scmp.lt.s32.totalorder %s157, 7
      %s159 = scalar_select %p158, %s157, 7
      %s160 = smul.addr %s159, 8
      %s161 = scalar_lea.vmem %s3, %s160
      %s162 = smul.u32 4, %s14
      %p163 = scmp.lt.s32.totalorder %s162, 7
      %s164 = scalar_select %p163, %s162, 7
      %s165 = smul.addr %s164, 4
      %s166 = scalar_lea.vmem %s0, %s165
      %s167 = smul.u32 4, %s14
      %s168 = smul.u32 4, %s14
      %p169 = scmp.lt.s32.totalorder %s168, 7
      %s170 = scalar_select %p169, %s168, 7
      %s171 = smul.addr %s170, 8
      %s172 = scalar_lea.vmem %s3, %s171
      %s173 = smul.u32 4, %s14
      %v175 = vld [vmem:[%s166] sm:$0xf]
      %v176 = vld [vmem:[%s166 + $0x4] sm:$0xf]
      %v177 = vld [vmem:[%s166 + $0x8] sm:$0xf]
      %v178 = vld [vmem:[%s166 + $0xc] sm:$0xf]
      %v179 = vld [vmem:[%s1] sm:$0xf]
      %v180 = vld [vmem:[%s1 + $0x4] sm:$0xf]
      %v181 = vld [vmem:[%s1 + $0x8] sm:$0xf]
      %v182 = vld [vmem:[%s1 + $0xc] sm:$0xf]
      %v183 = vld [vmem:[%s2] sm:$0xf]
      %v184 = vld [vmem:[%s2 + $0x4] sm:$0xf]
      %v185 = vld [vmem:[%s2 + $0x8] sm:$0xf]
      %v186 = vld [vmem:[%s2 + $0xc] sm:$0xf]
      %v191 = vunpack.c.l.b16 %v175
      %v192 = vunpack.c.l.b16 %v176
      %v193 = vunpack.c.l.b16 %v177
      %v194 = vunpack.c.l.b16 %v178
      %v195 = vpack.c.b16 %v192, %v191
      %v196 = vpack.c.b16 %v194, %v193
      %v201 = vunpack.c.l.b16 %v179
      %v202 = vunpack.c.l.b16 %v180
      %v203 = vunpack.c.l.b16 %v181
      %v204 = vunpack.c.l.b16 %v182
      %v205 = vpack.c.b16 %v202, %v201
      %v206 = vpack.c.b16 %v204, %v203
      %vm209 = vcmask 261120
      %v211 = vsel %vm209, %v195, 0
      %v214 = vsel %vm209, %v196, 0
      %216 = vmatpush.bf16.msra.mxu0 0
      %217 = vmatpush.bf16.msra.mxu0 0
      %218 = vmatpush.bf16.msra.mxu0 0
      %219 = vmatpush.bf16.msra.mxu0 0
      %220 = vmatpush.bf16.msra.mxu0 0
      %221 = vmatpush.bf16.msra.mxu0 0
      %222 = vmatpush.bf16.msra.mxu0 %v206
      %223 = vmatpush.bf16.msra.mxu0 %v205
      %224 = vmatmul.bf16.gmra.mxu0 %v211
      %v225 = vpop.f32.mrf.mxu0
      %v226 = vadd.f32 0.0, %v225
      %v227 = vpop.f32.mrf.mxu0
      %v228 = vadd.f32 0.0, %v227
      %229 = vmatmul.bf16.gmra.mxu0 %v214
      %v230 = vpop.f32.mrf.mxu0
      %v231 = vadd.f32 0.0, %v230
      %v232 = vpop.f32.mrf.mxu0
      %v233 = vadd.f32 0.0, %v232
      %234 = vdwg.mxu0
      %v235 = vpack.c.bf16 %v226, %v226
      %v236 = vpack.c.bf16 %v228, %v228
      %v237 = vpack.c.bf16 %v231, %v231
      %v238 = vpack.c.bf16 %v233, %v233
      %v240 = vunpack.c.l.b16 %v235
      %v241 = vpack.c.b16 %v240, %v240
      %242 = vrot.lane.b32.xlu0 %v241, 96
      %v243 = vpop.permute.xlu0 %242
      %vm244 = vcmask 64512
      %v246 = vsel %vm244, %v235, 0
      %v249 = vsel %vm244, %v243, 0
      %251 = vmatpush.bf16.xpose.msra.mxu0 0
      %252 = vmatpush.bf16.xpose.msra.mxu0 0
      %253 = vmatpush.bf16.xpose.msra.mxu0 0
      %254 = vmatpush.bf16.xpose.msra.mxu0 0
      %255 = vmatpush.bf16.xpose.msra.mxu0 0
      %256 = vmatpush.bf16.xpose.msra.mxu0 0
      %257 = vmatpush.bf16.xpose.msra.mxu0 0
      %258 = vmatpush.bf16.xpose.msra.mxu0 %v249
      %259 = vmatmul.bf16.gmra.mxu0 %v246
      %v260 = vpop.f32.mrf.mxu0
      %v261 = vadd.f32 0.0, %v260
      %v262 = vpop.f32.mrf.mxu0
      %263 = vdwg.mxu0
      %v265 = vunpack.c.l.b16 %v236
      %v266 = vpack.c.b16 %v265, %v265
      %267 = vrot.lane.b32.xlu0 %v266, 96
      %v268 = vpop.permute.xlu0 %267
      %v270 = vsel %vm244, %v236, 0
      %v273 = vsel %vm244, %v268, 0
      %275 = vmatpush.bf16.xpose.msra.mxu0 0
      %276 = vmatpush.bf16.xpose.msra.mxu0 0
      %277 = vmatpush.bf16.xpose.msra.mxu0 0
      %278 = vmatpush.bf16.xpose.msra.mxu0 0
      %279 = vmatpush.bf16.xpose.msra.mxu0 0
      %280 = vmatpush.bf16.xpose.msra.mxu0 0
      %281 = vmatpush.bf16.xpose.msra.mxu0 0
      %282 = vmatpush.bf16.xpose.msra.mxu0 %v273
      %283 = vmatmul.bf16.gmra.mxu0 %v270
      %v284 = vpop.f32.mrf.mxu0
      %v285 = vadd.f32 0.0, %v284
      %v286 = vpop.f32.mrf.mxu0
      %287 = vdwg.mxu0
      %v289 = vunpack.c.l.b16 %v237
      %v290 = vpack.c.b16 %v289, %v289
      %291 = vrot.lane.b32.xlu0 %v290, 96
      %v292 = vpop.permute.xlu0 %291
      %v294 = vsel %vm244, %v237, 0
      %v297 = vsel %vm244, %v292, 0
      %299 = vmatpush.bf16.xpose.msra.mxu0 0
      %300 = vmatpush.bf16.xpose.msra.mxu0 0
      %301 = vmatpush.bf16.xpose.msra.mxu0 0
      %302 = vmatpush.bf16.xpose.msra.mxu0 0
      %303 = vmatpush.bf16.xpose.msra.mxu0 0
      %304 = vmatpush.bf16.xpose.msra.mxu0 0
      %305 = vmatpush.bf16.xpose.msra.mxu0 0
      %306 = vmatpush.bf16.xpose.msra.mxu0 %v297
      %307 = vmatmul.bf16.gmra.mxu0 %v294
      %v308 = vpop.f32.mrf.mxu0
      %v309 = vadd.f32 0.0, %v308
      %v310 = vpop.f32.mrf.mxu0
      %311 = vdwg.mxu0
      %v313 = vunpack.c.l.b16 %v238
      %v314 = vpack.c.b16 %v313, %v313
      %315 = vrot.lane.b32.xlu0 %v314, 96
      %v316 = vpop.permute.xlu0 %315
      %v318 = vsel %vm244, %v238, 0
      %v321 = vsel %vm244, %v316, 0
      %323 = vmatpush.bf16.xpose.msra.mxu0 0
      %324 = vmatpush.bf16.xpose.msra.mxu0 0
      %325 = vmatpush.bf16.xpose.msra.mxu0 0
      %326 = vmatpush.bf16.xpose.msra.mxu0 0
      %327 = vmatpush.bf16.xpose.msra.mxu0 0
      %328 = vmatpush.bf16.xpose.msra.mxu0 0
      %329 = vmatpush.bf16.xpose.msra.mxu0 0
      %330 = vmatpush.bf16.xpose.msra.mxu0 %v321
      %331 = vmatmul.bf16.gmra.mxu0 %v318
      %v332 = vpop.f32.mrf.mxu0
      %v333 = vadd.f32 0.0, %v332
      %v334 = vpop.f32.mrf.mxu0
      %335 = vdwg.mxu0
      %v336 = vmul.f32 %v261, 0.17677669
      %v337 = vmul.f32 %v285, 0.17677669
      %v338 = vmul.f32 %v309, 0.17677669
      %v339 = vmul.f32 %v333, 0.17677669
      %v340 = vsel %vm244, %v336, -inf
      %341 = vmax.xlane.f32.xlu0 %v340
      %v342 = vpop.xlane.xlu0 %341
      %v343 = vsel %vm244, %v337, -inf
      %344 = vmax.xlane.f32.xlu0 %v343
      %v345 = vpop.xlane.xlu0 %344
      %v346 = vsel %vm244, %v338, -inf
      %347 = vmax.xlane.f32.xlu0 %v346
      %v348 = vpop.xlane.xlu0 %347
      %v349 = vsel %vm244, %v339, -inf
      %350 = vmax.xlane.f32.xlu0 %v349
      %v351 = vpop.xlane.xlu0 %350
      %v352 = vsub.f32 %v336, %v342
      %v353 = vsub.f32 %v337, %v345
      %v354 = vsub.f32 %v338, %v348
      %v355 = vsub.f32 %v339, %v351
      %v356 = vmul.f32 %v352, 1.442695
      %v357 = vpow.pop %v356
      %v358 = vmul.f32 %v353, 1.442695
      %v359 = vpow.pop %v358
      %v360 = vmul.f32 %v354, 1.442695
      %v361 = vpow.pop %v360
      %v362 = vmul.f32 %v355, 1.442695
      %v363 = vpow.pop %v362
      %v364 = vsel %vm244, %v357, 0.0
      %365 = vadd.xlane.f32.xlu0 %v364
      %v366 = vpop.xlane.xlu0 %365
      %v367 = vsel %vm244, %v359, 0.0
      %368 = vadd.xlane.f32.xlu0 %v367
      %v369 = vpop.xlane.xlu0 %368
      %v370 = vsel %vm244, %v361, 0.0
      %371 = vadd.xlane.f32.xlu0 %v370
      %v372 = vpop.xlane.xlu0 %371
      %v373 = vsel %vm244, %v363, 0.0
      %374 = vadd.xlane.f32.xlu0 %v373
      %v375 = vpop.xlane.xlu0 %374
      %v376 = vpack.c.bf16 %v357, %v357
      %v377 = vpack.c.bf16 %v359, %v359
      %v378 = vpack.c.bf16 %v361, %v361
      %v379 = vpack.c.bf16 %v363, %v363
      %380 = vrot.lane.b32.xlu0 %v241, 64
      %v381 = vpop.permute.xlu0 %380
      %v383 = vsel %vm244, %v376, 0
      %vm385 = vcmask 1043456
      %v387 = vsel %vm385, %v381, 0
      %389 = vmatpush.bf16.msra.mxu0 0
      %390 = vmatpush.bf16.msra.mxu0 0
      %391 = vmatpush.bf16.msra.mxu0 0
      %392 = vmatpush.bf16.msra.mxu0 0
      %393 = vmatpush.bf16.msra.mxu0 0
      %394 = vmatpush.bf16.msra.mxu0 0
      %395 = vmatpush.bf16.msra.mxu0 0
      %396 = vmatpush.bf16.msra.mxu0 %v387
      %397 = vmatmul.bf16.gmra.mxu0 %v383
      %v398 = vpop.f32.mrf.mxu0
      %v399 = vadd.f32 0.0, %v398
      %v400 = vpop.f32.mrf.mxu0
      %401 = vdwg.mxu0
      %402 = vrot.lane.b32.xlu0 %v266, 64
      %v403 = vpop.permute.xlu0 %402
      %v405 = vsel %vm244, %v377, 0
      %v408 = vsel %vm385, %v403, 0
      %410 = vmatpush.bf16.msra.mxu0 0
      %411 = vmatpush.bf16.msra.mxu0 0
      %412 = vmatpush.bf16.msra.mxu0 0
      %413 = vmatpush.bf16.msra.mxu0 0
      %414 = vmatpush.bf16.msra.mxu0 0
      %415 = vmatpush.bf16.msra.mxu0 0
      %416 = vmatpush.bf16.msra.mxu0 0
      %417 = vmatpush.bf16.msra.mxu0 %v408
      %418 = vmatmul.bf16.gmra.mxu0 %v405
      %v419 = vpop.f32.mrf.mxu0
      %v420 = vadd.f32 0.0, %v419
      %v421 = vpop.f32.mrf.mxu0
      %422 = vdwg.mxu0
      %423 = vrot.lane.b32.xlu0 %v290, 64
      %v424 = vpop.permute.xlu0 %423
      %v426 = vsel %vm244, %v378, 0
      %v429 = vsel %vm385, %v424, 0
      %431 = vmatpush.bf16.msra.mxu0 0
      %432 = vmatpush.bf16.msra.mxu0 0
      %433 = vmatpush.bf16.msra.mxu0 0
      %434 = vmatpush.bf16.msra.mxu0 0
      %435 = vmatpush.bf16.msra.mxu0 0
      %436 = vmatpush.bf16.msra.mxu0 0
      %437 = vmatpush.bf16.msra.mxu0 0
      %438 = vmatpush.bf16.msra.mxu0 %v429
      %439 = vmatmul.bf16.gmra.mxu0 %v426
      %v440 = vpop.f32.mrf.mxu0
      %v441 = vadd.f32 0.0, %v440
      %v442 = vpop.f32.mrf.mxu0
      %443 = vdwg.mxu0
      %444 = vrot.lane.b32.xlu0 %v314, 64
      %v445 = vpop.permute.xlu0 %444
      %v447 = vsel %vm244, %v379, 0
      %v450 = vsel %vm385, %v445, 0
      %452 = vmatpush.bf16.msra.mxu0 0
      %453 = vmatpush.bf16.msra.mxu0 0
      %454 = vmatpush.bf16.msra.mxu0 0
      %455 = vmatpush.bf16.msra.mxu0 0
      %456 = vmatpush.bf16.msra.mxu0 0
      %457 = vmatpush.bf16.msra.mxu0 0
      %458 = vmatpush.bf16.msra.mxu0 0
      %459 = vmatpush.bf16.msra.mxu0 %v450
      %460 = vmatmul.bf16.gmra.mxu0 %v447
      %v461 = vpop.f32.mrf.mxu0
      %v462 = vadd.f32 0.0, %v461
      %v463 = vpop.f32.mrf.mxu0
      %464 = vdwg.mxu0
      %v465 = vrcp.pop %v366
      %v466 = vrcp.pop %v369
      %v467 = vrcp.pop %v372
      %v468 = vrcp.pop %v375
      %v469 = vmul.f32 %v399, %v465
      %v470 = vmul.f32 %v420, %v466
      %v471 = vmul.f32 %v441, %v467
      %v472 = vmul.f32 %v462, %v468
      %v473 = vpack.c.bf16 %v469, %v469
      %v474 = vpack.c.bf16 %v470, %v470
      %v475 = vpack.c.bf16 %v471, %v471
      %v476 = vpack.c.bf16 %v472, %v472
      %vm477 = vcmask 60416
      %478 = vst.msk [vmem:[#allocation2] sm:$0xf] %vm477, %v473
      %479 = vst.msk [vmem:[#allocation2 + $0x4] sm:$0xf] %vm477, %v474
      %480 = vst.msk [vmem:[#allocation2 + $0x8] sm:$0xf] %vm477, %v475
      %481 = vst.msk [vmem:[#allocation2 + $0xc] sm:$0xf] %vm477, %v476
      %482 = vrot.lane.b32.xlu0 %v241, 120
      %v483 = vpop.permute.xlu0 %482
      %484 = vrot.lane.b32.xlu0 %v241, 88
      %v485 = vpop.permute.xlu0 %484
      %v487 = vsel %vm244, %v483, 0
      %v490 = vsel %vm244, %v485, 0
      %492 = vmatpush.bf16.xpose.msra.mxu0 0
      %493 = vmatpush.bf16.xpose.msra.mxu0 0
      %494 = vmatpush.bf16.xpose.msra.mxu0 0
      %495 = vmatpush.bf16.xpose.msra.mxu0 0
      %496 = vmatpush.bf16.xpose.msra.mxu0 0
      %497 = vmatpush.bf16.xpose.msra.mxu0 0
      %498 = vmatpush.bf16.xpose.msra.mxu0 0
      %499 = vmatpush.bf16.xpose.msra.mxu0 %v490
      %500 = vmatmul.bf16.gmra.mxu0 %v487
      %v501 = vpop.f32.mrf.mxu0
      %v502 = vadd.f32 0.0, %v501
      %v503 = vpop.f32.mrf.mxu0
      %504 = vdwg.mxu0
      %505 = vrot.lane.b32.xlu0 %v266, 120
      %v506 = vpop.permute.xlu0 %505
      %507 = vrot.lane.b32.xlu0 %v266, 88
      %v508 = vpop.permute.xlu0 %507
      %v510 = vsel %vm244, %v506, 0
      %v513 = vsel %vm244, %v508, 0
      %515 = vmatpush.bf16.xpose.msra.mxu0 0
      %516 = vmatpush.bf16.xpose.msra.mxu0 0
      %517 = vmatpush.bf16.xpose.msra.mxu0 0
      %518 = vmatpush.bf16.xpose.msra.mxu0 0
      %519 = vmatpush.bf16.xpose.msra.mxu0 0
      %520 = vmatpush.bf16.xpose.msra.mxu0 0
      %521 = vmatpush.bf16.xpose.msra.mxu0 0
      %522 = vmatpush.bf16.xpose.msra.mxu0 %v513
      %523 = vmatmul.bf16.gmra.mxu0 %v510
      %v524 = vpop.f32.mrf.mxu0
      %v525 = vadd.f32 0.0, %v524
      %v526 = vpop.f32.mrf.mxu0
      %527 = vdwg.mxu0
      %528 = vrot.lane.b32.xlu0 %v290, 120
      %v529 = vpop.permute.xlu0 %528
      %530 = vrot.lane.b32.xlu0 %v290, 88
      %v531 = vpop.permute.xlu0 %530
      %v533 = vsel %vm244, %v529, 0
      %v536 = vsel %vm244, %v531, 0
      %538 = vmatpush.bf16.xpose.msra.mxu0 0
      %539 = vmatpush.bf16.xpose.msra.mxu0 0
      %540 = vmatpush.bf16.xpose.msra.mxu0 0
      %541 = vmatpush.bf16.xpose.msra.mxu0 0
      %542 = vmatpush.bf16.xpose.msra.mxu0 0
      %543 = vmatpush.bf16.xpose.msra.mxu0 0
      %544 = vmatpush.bf16.xpose.msra.mxu0 0
      %545 = vmatpush.bf16.xpose.msra.mxu0 %v536
      %546 = vmatmul.bf16.gmra.mxu0 %v533
      %v547 = vpop.f32.mrf.mxu0
      %v548 = vadd.f32 0.0, %v547
      %v549 = vpop.f32.mrf.mxu0
      %550 = vdwg.mxu0
      %551 = vrot.lane.b32.xlu0 %v314, 120
      %v552 = vpop.permute.xlu0 %551
      %553 = vrot.lane.b32.xlu0 %v314, 88
      %v554 = vpop.permute.xlu0 %553
      %v556 = vsel %vm244, %v552, 0
      %v559 = vsel %vm244, %v554, 0
      %561 = vmatpush.bf16.xpose.msra.mxu0 0
      %562 = vmatpush.bf16.xpose.msra.mxu0 0
      %563 = vmatpush.bf16.xpose.msra.mxu0 0
      %564 = vmatpush.bf16.xpose.msra.mxu0 0
      %565 = vmatpush.bf16.xpose.msra.mxu0 0
      %566 = vmatpush.bf16.xpose.msra.mxu0 0
      %567 = vmatpush.bf16.xpose.msra.mxu0 0
      %568 = vmatpush.bf16.xpose.msra.mxu0 %v559
      %569 = vmatmul.bf16.gmra.mxu0 %v556
      %v570 = vpop.f32.mrf.mxu0
      %v571 = vadd.f32 0.0, %v570
      %v572 = vpop.f32.mrf.mxu0
      %573 = vdwg.mxu0
      %v574 = vmul.f32 %v502, 0.17677669
      %v575 = vmul.f32 %v525, 0.17677669
      %v576 = vmul.f32 %v548, 0.17677669
      %v577 = vmul.f32 %v571, 0.17677669
      %v578 = vsel %vm244, %v574, -inf
      %579 = vmax.xlane.f32.xlu0 %v578
      %v580 = vpop.xlane.xlu0 %579
      %v581 = vsel %vm244, %v575, -inf
      %582 = vmax.xlane.f32.xlu0 %v581
      %v583 = vpop.xlane.xlu0 %582
      %v584 = vsel %vm244, %v576, -inf
      %585 = vmax.xlane.f32.xlu0 %v584
      %v586 = vpop.xlane.xlu0 %585
      %v587 = vsel %vm244, %v577, -inf
      %588 = vmax.xlane.f32.xlu0 %v587
      %v589 = vpop.xlane.xlu0 %588
      %v590 = vsub.f32 %v574, %v580
      %v591 = vsub.f32 %v575, %v583
      %v592 = vsub.f32 %v576, %v586
      %v593 = vsub.f32 %v577, %v589
      %v594 = vmul.f32 %v590, 1.442695
      %v595 = vpow.pop %v594
      %v596 = vmul.f32 %v591, 1.442695
      %v597 = vpow.pop %v596
      %v598 = vmul.f32 %v592, 1.442695
      %v599 = vpow.pop %v598
      %v600 = vmul.f32 %v593, 1.442695
      %v601 = vpow.pop %v600
      %v602 = vsel %vm244, %v595, 0.0
      %603 = vadd.xlane.f32.xlu0 %v602
      %v604 = vpop.xlane.xlu0 %603
      %v605 = vsel %vm244, %v597, 0.0
      %606 = vadd.xlane.f32.xlu0 %v605
      %v607 = vpop.xlane.xlu0 %606
      %v608 = vsel %vm244, %v599, 0.0
      %609 = vadd.xlane.f32.xlu0 %v608
      %v610 = vpop.xlane.xlu0 %609
      %v611 = vsel %vm244, %v601, 0.0
      %612 = vadd.xlane.f32.xlu0 %v611
      %v613 = vpop.xlane.xlu0 %612
      %v614 = vpack.c.bf16 %v595, %v595
      %v615 = vpack.c.bf16 %v597, %v597
      %v616 = vpack.c.bf16 %v599, %v599
      %v617 = vpack.c.bf16 %v601, %v601
      %618 = vrot.lane.b32.xlu0 %v241, 56
      %v619 = vpop.permute.xlu0 %618
      %v621 = vsel %vm244, %v614, 0
      %v624 = vsel %vm385, %v619, 0
      %626 = vmatpush.bf16.msra.mxu0 0
      %627 = vmatpush.bf16.msra.mxu0 0
      %628 = vmatpush.bf16.msra.mxu0 0
      %629 = vmatpush.bf16.msra.mxu0 0
      %630 = vmatpush.bf16.msra.mxu0 0
      %631 = vmatpush.bf16.msra.mxu0 0
      %632 = vmatpush.bf16.msra.mxu0 0
      %633 = vmatpush.bf16.msra.mxu0 %v624
      %634 = vmatmul.bf16.gmra.mxu0 %v621
      %v635 = vpop.f32.mrf.mxu0
      %v636 = vadd.f32 0.0, %v635
      %v637 = vpop.f32.mrf.mxu0
      %638 = vdwg.mxu0
      %639 = vrot.lane.b32.xlu0 %v266, 56
      %v640 = vpop.permute.xlu0 %639
      %v642 = vsel %vm244, %v615, 0
      %v645 = vsel %vm385, %v640, 0
      %647 = vmatpush.bf16.msra.mxu0 0
      %648 = vmatpush.bf16.msra.mxu0 0
      %649 = vmatpush.bf16.msra.mxu0 0
      %650 = vmatpush.bf16.msra.mxu0 0
      %651 = vmatpush.bf16.msra.mxu0 0
      %652 = vmatpush.bf16.msra.mxu0 0
      %653 = vmatpush.bf16.msra.mxu0 0
      %654 = vmatpush.bf16.msra.mxu0 %v645
      %655 = vmatmul.bf16.gmra.mxu0 %v642
      %v656 = vpop.f32.mrf.mxu0
      %v657 = vadd.f32 0.0, %v656
      %v658 = vpop.f32.mrf.mxu0
      %659 = vdwg.mxu0
      %660 = vrot.lane.b32.xlu0 %v290, 56
      %v661 = vpop.permute.xlu0 %660
      %v663 = vsel %vm244, %v616, 0
      %v666 = vsel %vm385, %v661, 0
      %668 = vmatpush.bf16.msra.mxu0 0
      %669 = vmatpush.bf16.msra.mxu0 0
      %670 = vmatpush.bf16.msra.mxu0 0
      %671 = vmatpush.bf16.msra.mxu0 0
      %672 = vmatpush.bf16.msra.mxu0 0
      %673 = vmatpush.bf16.msra.mxu0 0
      %674 = vmatpush.bf16.msra.mxu0 0
      %675 = vmatpush.bf16.msra.mxu0 %v666
      %676 = vmatmul.bf16.gmra.mxu0 %v663
      %v677 = vpop.f32.mrf.mxu0
      %v678 = vadd.f32 0.0, %v677
      %v679 = vpop.f32.mrf.mxu0
      %680 = vdwg.mxu0
      %681 = vrot.lane.b32.xlu0 %v314, 56
      %v682 = vpop.permute.xlu0 %681
      %v684 = vsel %vm244, %v617, 0
      %v687 = vsel %vm385, %v682, 0
      %689 = vmatpush.bf16.msra.mxu0 0
      %690 = vmatpush.bf16.msra.mxu0 0
      %691 = vmatpush.bf16.msra.mxu0 0
      %692 = vmatpush.bf16.msra.mxu0 0
      %693 = vmatpush.bf16.msra.mxu0 0
      %694 = vmatpush.bf16.msra.mxu0 0
      %695 = vmatpush.bf16.msra.mxu0 0
      %696 = vmatpush.bf16.msra.mxu0 %v687
      %697 = vmatmul.bf16.gmra.mxu0 %v684
      %v698 = vpop.f32.mrf.mxu0
      %v699 = vadd.f32 0.0, %v698
      %v700 = vpop.f32.mrf.mxu0
      %701 = vdwg.mxu0
      %v702 = vrcp.pop %v604
      %v703 = vrcp.pop %v607
      %v704 = vrcp.pop %v610
      %v705 = vrcp.pop %v613
      %v706 = vmul.f32 %v636, %v702
      %v707 = vmul.f32 %v657, %v703
      %v708 = vmul.f32 %v678, %v704
      %v709 = vmul.f32 %v699, %v705
      %v710 = vpack.c.bf16 %v706, %v706
      %v711 = vpack.c.bf16 %v707, %v707
      %v712 = vpack.c.bf16 %v708, %v708
      %v713 = vpack.c.bf16 %v709, %v709
      %718 = vrot.lane.b32.xlu0 %v710, 8
      %v719 = vpop.permute.xlu0 %718
      %720 = vrot.lane.b32.xlu0 %v711, 8
      %v721 = vpop.permute.xlu0 %720
      %722 = vrot.lane.b32.xlu0 %v712, 8
      %v723 = vpop.permute.xlu0 %722
      %724 = vrot.lane.b32.xlu0 %v713, 8
      %v725 = vpop.permute.xlu0 %724
      %vm730 = vcmask 126016
      %731 = vst.msk [vmem:[#allocation2] sm:$0xf] %vm730, %v719
      %732 = vst.msk [vmem:[#allocation2 + $0x4] sm:$0xf] %vm730, %v721
      %733 = vst.msk [vmem:[#allocation2 + $0x8] sm:$0xf] %vm730, %v723
      %734 = vst.msk [vmem:[#allocation2 + $0xc] sm:$0xf] %vm730, %v725
      %735 = vrot.lane.b32.xlu0 %v241, 112
      %v736 = vpop.permute.xlu0 %735
      %737 = vrot.lane.b32.xlu0 %v241, 80
      %v738 = vpop.permute.xlu0 %737
      %v740 = vsel %vm244, %v736, 0
      %v743 = vsel %vm244, %v738, 0
      %745 = vmatpush.bf16.xpose.msra.mxu0 0
      %746 = vmatpush.bf16.xpose.msra.mxu0 0
      %747 = vmatpush.bf16.xpose.msra.mxu0 0
      %748 = vmatpush.bf16.xpose.msra.mxu0 0
      %749 = vmatpush.bf16.xpose.msra.mxu0 0
      %750 = vmatpush.bf16.xpose.msra.mxu0 0
      %751 = vmatpush.bf16.xpose.msra.mxu0 0
      %752 = vmatpush.bf16.xpose.msra.mxu0 %v743
      %753 = vmatmul.bf16.gmra.mxu0 %v740
      %v754 = vpop.f32.mrf.mxu0
      %v755 = vadd.f32 0.0, %v754
      %v756 = vpop.f32.mrf.mxu0
      %757 = vdwg.mxu0
      %758 = vrot.lane.b32.xlu0 %v266, 112
      %v759 = vpop.permute.xlu0 %758
      %760 = vrot.lane.b32.xlu0 %v266, 80
      %v761 = vpop.permute.xlu0 %760
      %v763 = vsel %vm244, %v759, 0
      %v766 = vsel %vm244, %v761, 0
      %768 = vmatpush.bf16.xpose.msra.mxu0 0
      %769 = vmatpush.bf16.xpose.msra.mxu0 0
      %770 = vmatpush.bf16.xpose.msra.mxu0 0
      %771 = vmatpush.bf16.xpose.msra.mxu0 0
      %772 = vmatpush.bf16.xpose.msra.mxu0 0
      %773 = vmatpush.bf16.xpose.msra.mxu0 0
      %774 = vmatpush.bf16.xpose.msra.mxu0 0
      %775 = vmatpush.bf16.xpose.msra.mxu0 %v766
      %776 = vmatmul.bf16.gmra.mxu0 %v763
      %v777 = vpop.f32.mrf.mxu0
      %v778 = vadd.f32 0.0, %v777
      %v779 = vpop.f32.mrf.mxu0
      %780 = vdwg.mxu0
      %781 = vrot.lane.b32.xlu0 %v290, 112
      %v782 = vpop.permute.xlu0 %781
      %783 = vrot.lane.b32.xlu0 %v290, 80
      %v784 = vpop.permute.xlu0 %783
      %v786 = vsel %vm244, %v782, 0
      %v789 = vsel %vm244, %v784, 0
      %791 = vmatpush.bf16.xpose.msra.mxu0 0
      %792 = vmatpush.bf16.xpose.msra.mxu0 0
      %793 = vmatpush.bf16.xpose.msra.mxu0 0
      %794 = vmatpush.bf16.xpose.msra.mxu0 0
      %795 = vmatpush.bf16.xpose.msra.mxu0 0
      %796 = vmatpush.bf16.xpose.msra.mxu0 0
      %797 = vmatpush.bf16.xpose.msra.mxu0 0
      %798 = vmatpush.bf16.xpose.msra.mxu0 %v789
      %799 = vmatmul.bf16.gmra.mxu0 %v786
      %v800 = vpop.f32.mrf.mxu0
      %v801 = vadd.f32 0.0, %v800
      %v802 = vpop.f32.mrf.mxu0
      %803 = vdwg.mxu0
      %804 = vrot.lane.b32.xlu0 %v314, 112
      %v805 = vpop.permute.xlu0 %804
      %806 = vrot.lane.b32.xlu0 %v314, 80
      %v807 = vpop.permute.xlu0 %806
      %v809 = vsel %vm244, %v805, 0
      %v812 = vsel %vm244, %v807, 0
      %814 = vmatpush.bf16.xpose.msra.mxu0 0
      %815 = vmatpush.bf16.xpose.msra.mxu0 0
      %816 = vmatpush.bf16.xpose.msra.mxu0 0
      %817 = vmatpush.bf16.xpose.msra.mxu0 0
      %818 = vmatpush.bf16.xpose.msra.mxu0 0
      %819 = vmatpush.bf16.xpose.msra.mxu0 0
      %820 = vmatpush.bf16.xpose.msra.mxu0 0
      %821 = vmatpush.bf16.xpose.msra.mxu0 %v812
      %822 = vmatmul.bf16.gmra.mxu0 %v809
      %v823 = vpop.f32.mrf.mxu0
      %v824 = vadd.f32 0.0, %v823
      %v825 = vpop.f32.mrf.mxu0
      %826 = vdwg.mxu0
      %v827 = vmul.f32 %v755, 0.17677669
      %v828 = vmul.f32 %v778, 0.17677669
      %v829 = vmul.f32 %v801, 0.17677669
      %v830 = vmul.f32 %v824, 0.17677669
      %v831 = vsel %vm244, %v827, -inf
      %832 = vmax.xlane.f32.xlu0 %v831
      %v833 = vpop.xlane.xlu0 %832
      %v834 = vsel %vm244, %v828, -inf
      %835 = vmax.xlane.f32.xlu0 %v834
      %v836 = vpop.xlane.xlu0 %835
      %v837 = vsel %vm244, %v829, -inf
      %838 = vmax.xlane.f32.xlu0 %v837
      %v839 = vpop.xlane.xlu0 %838
      %v840 = vsel %vm244, %v830, -inf
      %841 = vmax.xlane.f32.xlu0 %v840
      %v842 = vpop.xlane.xlu0 %841
      %v843 = vsub.f32 %v827, %v833
      %v844 = vsub.f32 %v828, %v836
      %v845 = vsub.f32 %v829, %v839
      %v846 = vsub.f32 %v830, %v842
      %v847 = vmul.f32 %v843, 1.442695
      %v848 = vpow.pop %v847
      %v849 = vmul.f32 %v844, 1.442695
      %v850 = vpow.pop %v849
      %v851 = vmul.f32 %v845, 1.442695
      %v852 = vpow.pop %v851
      %v853 = vmul.f32 %v846, 1.442695
      %v854 = vpow.pop %v853
      %v855 = vsel %vm244, %v848, 0.0
      %856 = vadd.xlane.f32.xlu0 %v855
      %v857 = vpop.xlane.xlu0 %856
      %v858 = vsel %vm244, %v850, 0.0
      %859 = vadd.xlane.f32.xlu0 %v858
      %v860 = vpop.xlane.xlu0 %859
      %v861 = vsel %vm244, %v852, 0.0
      %862 = vadd.xlane.f32.xlu0 %v861
      %v863 = vpop.xlane.xlu0 %862
      %v864 = vsel %vm244, %v854, 0.0
      %865 = vadd.xlane.f32.xlu0 %v864
      %v866 = vpop.xlane.xlu0 %865
      %v867 = vpack.c.bf16 %v848, %v848
      %v868 = vpack.c.bf16 %v850, %v850
      %v869 = vpack.c.bf16 %v852, %v852
      %v870 = vpack.c.bf16 %v854, %v854
      %871 = vrot.lane.b32.xlu0 %v241, 48
      %v872 = vpop.permute.xlu0 %871
      %v874 = vsel %vm244, %v867, 0
      %v877 = vsel %vm385, %v872, 0
      %879 = vmatpush.bf16.msra.mxu0 0
      %880 = vmatpush.bf16.msra.mxu0 0
      %881 = vmatpush.bf16.msra.mxu0 0
      %882 = vmatpush.bf16.msra.mxu0 0
      %883 = vmatpush.bf16.msra.mxu0 0
      %884 = vmatpush.bf16.msra.mxu0 0
      %885 = vmatpush.bf16.msra.mxu0 0
      %886 = vmatpush.bf16.msra.mxu0 %v877
      %887 = vmatmul.bf16.gmra.mxu0 %v874
      %v888 = vpop.f32.mrf.mxu0
      %v889 = vadd.f32 0.0, %v888
      %v890 = vpop.f32.mrf.mxu0
      %891 = vdwg.mxu0
      %892 = vrot.lane.b32.xlu0 %v266, 48
      %v893 = vpop.permute.xlu0 %892
      %v895 = vsel %vm244, %v868, 0
      %v898 = vsel %vm385, %v893, 0
      %900 = vmatpush.bf16.msra.mxu0 0
      %901 = vmatpush.bf16.msra.mxu0 0
      %902 = vmatpush.bf16.msra.mxu0 0
      %903 = vmatpush.bf16.msra.mxu0 0
      %904 = vmatpush.bf16.msra.mxu0 0
      %905 = vmatpush.bf16.msra.mxu0 0
      %906 = vmatpush.bf16.msra.mxu0 0
      %907 = vmatpush.bf16.msra.mxu0 %v898
      %908 = vmatmul.bf16.gmra.mxu0 %v895
      %v909 = vpop.f32.mrf.mxu0
      %v910 = vadd.f32 0.0, %v909
      %v911 = vpop.f32.mrf.mxu0
      %912 = vdwg.mxu0
      %913 = vrot.lane.b32.xlu0 %v290, 48
      %v914 = vpop.permute.xlu0 %913
      %v916 = vsel %vm244, %v869, 0
      %v919 = vsel %vm385, %v914, 0
      %921 = vmatpush.bf16.msra.mxu0 0
      %922 = vmatpush.bf16.msra.mxu0 0
      %923 = vmatpush.bf16.msra.mxu0 0
      %924 = vmatpush.bf16.msra.mxu0 0
      %925 = vmatpush.bf16.msra.mxu0 0
      %926 = vmatpush.bf16.msra.mxu0 0
      %927 = vmatpush.bf16.msra.mxu0 0
      %928 = vmatpush.bf16.msra.mxu0 %v919
      %929 = vmatmul.bf16.gmra.mxu0 %v916
      %v930 = vpop.f32.mrf.mxu0
      %v931 = vadd.f32 0.0, %v930
      %v932 = vpop.f32.mrf.mxu0
      %933 = vdwg.mxu0
      %934 = vrot.lane.b32.xlu0 %v314, 48
      %v935 = vpop.permute.xlu0 %934
      %v937 = vsel %vm244, %v870, 0
      %v940 = vsel %vm385, %v935, 0
      %942 = vmatpush.bf16.msra.mxu0 0
      %943 = vmatpush.bf16.msra.mxu0 0
      %944 = vmatpush.bf16.msra.mxu0 0
      %945 = vmatpush.bf16.msra.mxu0 0
      %946 = vmatpush.bf16.msra.mxu0 0
      %947 = vmatpush.bf16.msra.mxu0 0
      %948 = vmatpush.bf16.msra.mxu0 0
      %949 = vmatpush.bf16.msra.mxu0 %v940
      %950 = vmatmul.bf16.gmra.mxu0 %v937
      %v951 = vpop.f32.mrf.mxu0
      %v952 = vadd.f32 0.0, %v951
      %v953 = vpop.f32.mrf.mxu0
      %954 = vdwg.mxu0
      %v955 = vrcp.pop %v857
      %v956 = vrcp.pop %v860
      %v957 = vrcp.pop %v863
      %v958 = vrcp.pop %v866
      %v959 = vmul.f32 %v889, %v955
      %v960 = vmul.f32 %v910, %v956
      %v961 = vmul.f32 %v931, %v957
      %v962 = vmul.f32 %v952, %v958
      %v963 = vpack.c.bf16 %v959, %v959
      %v964 = vpack.c.bf16 %v960, %v960
      %v965 = vpack.c.bf16 %v961, %v961
      %v966 = vpack.c.bf16 %v962, %v962
      %971 = vrot.lane.b32.xlu0 %v963, 16
      %v972 = vpop.permute.xlu0 %971
      %973 = vrot.lane.b32.xlu0 %v964, 16
      %v974 = vpop.permute.xlu0 %973
      %975 = vrot.lane.b32.xlu0 %v965, 16
      %v976 = vpop.permute.xlu0 %975
      %977 = vrot.lane.b32.xlu0 %v966, 16
      %v978 = vpop.permute.xlu0 %977
      %vm983 = vcmask 191616
      %984 = vst.msk [vmem:[#allocation2] sm:$0xf] %vm983, %v972
      %985 = vst.msk [vmem:[#allocation2 + $0x4] sm:$0xf] %vm983, %v974
      %986 = vst.msk [vmem:[#allocation2 + $0x8] sm:$0xf] %vm983, %v976
      %987 = vst.msk [vmem:[#allocation2 + $0xc] sm:$0xf] %vm983, %v978
      %988 = vrot.lane.b32.xlu0 %v241, 104
      %v989 = vpop.permute.xlu0 %988
      %990 = vrot.lane.b32.xlu0 %v241, 72
      %v991 = vpop.permute.xlu0 %990
      %v993 = vsel %vm244, %v989, 0
      %v996 = vsel %vm244, %v991, 0
      %998 = vmatpush.bf16.xpose.msra.mxu0 0
      %999 = vmatpush.bf16.xpose.msra.mxu0 0
      %1000 = vmatpush.bf16.xpose.msra.mxu0 0
      %1001 = vmatpush.bf16.xpose.msra.mxu0 0
      %1002 = vmatpush.bf16.xpose.msra.mxu0 0
      %1003 = vmatpush.bf16.xpose.msra.mxu0 0
      %1004 = vmatpush.bf16.xpose.msra.mxu0 0
      %1005 = vmatpush.bf16.xpose.msra.mxu0 %v996
      %1006 = vmatmul.bf16.gmra.mxu0 %v993
      %v1007 = vpop.f32.mrf.mxu0
      %v1008 = vadd.f32 0.0, %v1007
      %v1009 = vpop.f32.mrf.mxu0
      %1010 = vdwg.mxu0
      %1011 = vrot.lane.b32.xlu0 %v266, 104
      %v1012 = vpop.permute.xlu0 %1011
      %1013 = vrot.lane.b32.xlu0 %v266, 72
      %v1014 = vpop.permute.xlu0 %1013
      %v1016 = vsel %vm244, %v1012, 0
      %v1019 = vsel %vm244, %v1014, 0
      %1021 = vmatpush.bf16.xpose.msra.mxu0 0
      %1022 = vmatpush.bf16.xpose.msra.mxu0 0
      %1023 = vmatpush.bf16.xpose.msra.mxu0 0
      %1024 = vmatpush.bf16.xpose.msra.mxu0 0
      %1025 = vmatpush.bf16.xpose.msra.mxu0 0
      %1026 = vmatpush.bf16.xpose.msra.mxu0 0
      %1027 = vmatpush.bf16.xpose.msra.mxu0 0
      %1028 = vmatpush.bf16.xpose.msra.mxu0 %v1019
      %1029 = vmatmul.bf16.gmra.mxu0 %v1016
      %v1030 = vpop.f32.mrf.mxu0
      %v1031 = vadd.f32 0.0, %v1030
      %v1032 = vpop.f32.mrf.mxu0
      %1033 = vdwg.mxu0
      %1034 = vrot.lane.b32.xlu0 %v290, 104
      %v1035 = vpop.permute.xlu0 %1034
      %1036 = vrot.lane.b32.xlu0 %v290, 72
      %v1037 = vpop.permute.xlu0 %1036
      %v1039 = vsel %vm244, %v1035, 0
      %v1042 = vsel %vm244, %v1037, 0
      %1044 = vmatpush.bf16.xpose.msra.mxu0 0
      %1045 = vmatpush.bf16.xpose.msra.mxu0 0
      %1046 = vmatpush.bf16.xpose.msra.mxu0 0
      %1047 = vmatpush.bf16.xpose.msra.mxu0 0
      %1048 = vmatpush.bf16.xpose.msra.mxu0 0
      %1049 = vmatpush.bf16.xpose.msra.mxu0 0
      %1050 = vmatpush.bf16.xpose.msra.mxu0 0
      %1051 = vmatpush.bf16.xpose.msra.mxu0 %v1042
      %1052 = vmatmul.bf16.gmra.mxu0 %v1039
      %v1053 = vpop.f32.mrf.mxu0
      %v1054 = vadd.f32 0.0, %v1053
      %v1055 = vpop.f32.mrf.mxu0
      %1056 = vdwg.mxu0
      %1057 = vrot.lane.b32.xlu0 %v314, 104
      %v1058 = vpop.permute.xlu0 %1057
      %1059 = vrot.lane.b32.xlu0 %v314, 72
      %v1060 = vpop.permute.xlu0 %1059
      %v1062 = vsel %vm244, %v1058, 0
      %v1065 = vsel %vm244, %v1060, 0
      %1067 = vmatpush.bf16.xpose.msra.mxu0 0
      %1068 = vmatpush.bf16.xpose.msra.mxu0 0
      %1069 = vmatpush.bf16.xpose.msra.mxu0 0
      %1070 = vmatpush.bf16.xpose.msra.mxu0 0
      %1071 = vmatpush.bf16.xpose.msra.mxu0 0
      %1072 = vmatpush.bf16.xpose.msra.mxu0 0
      %1073 = vmatpush.bf16.xpose.msra.mxu0 0
      %1074 = vmatpush.bf16.xpose.msra.mxu0 %v1065
      %1075 = vmatmul.bf16.gmra.mxu0 %v1062
      %v1076 = vpop.f32.mrf.mxu0
      %v1077 = vadd.f32 0.0, %v1076
      %v1078 = vpop.f32.mrf.mxu0
      %1079 = vdwg.mxu0
      %v1080 = vmul.f32 %v1008, 0.17677669
      %v1081 = vmul.f32 %v1031, 0.17677669
      %v1082 = vmul.f32 %v1054, 0.17677669
      %v1083 = vmul.f32 %v1077, 0.17677669
      %v1084 = vsel %vm244, %v1080, -inf
      %1085 = vmax.xlane.f32.xlu0 %v1084
      %v1086 = vpop.xlane.xlu0 %1085
      %v1087 = vsel %vm244, %v1081, -inf
      %1088 = vmax.xlane.f32.xlu0 %v1087
      %v1089 = vpop.xlane.xlu0 %1088
      %v1090 = vsel %vm244, %v1082, -inf
      %1091 = vmax.xlane.f32.xlu0 %v1090
      %v1092 = vpop.xlane.xlu0 %1091
      %v1093 = vsel %vm244, %v1083, -inf
      %1094 = vmax.xlane.f32.xlu0 %v1093
      %v1095 = vpop.xlane.xlu0 %1094
      %v1096 = vsub.f32 %v1080, %v1086
      %v1097 = vsub.f32 %v1081, %v1089
      %v1098 = vsub.f32 %v1082, %v1092
      %v1099 = vsub.f32 %v1083, %v1095
      %v1100 = vmul.f32 %v1096, 1.442695
      %v1101 = vpow.pop %v1100
      %v1102 = vmul.f32 %v1097, 1.442695
      %v1103 = vpow.pop %v1102
      %v1104 = vmul.f32 %v1098, 1.442695
      %v1105 = vpow.pop %v1104
      %v1106 = vmul.f32 %v1099, 1.442695
      %v1107 = vpow.pop %v1106
      %v1108 = vsel %vm244, %v1101, 0.0
      %1109 = vadd.xlane.f32.xlu0 %v1108
      %v1110 = vpop.xlane.xlu0 %1109
      %v1111 = vsel %vm244, %v1103, 0.0
      %1112 = vadd.xlane.f32.xlu0 %v1111
      %v1113 = vpop.xlane.xlu0 %1112
      %v1114 = vsel %vm244, %v1105, 0.0
      %1115 = vadd.xlane.f32.xlu0 %v1114
      %v1116 = vpop.xlane.xlu0 %1115
      %v1117 = vsel %vm244, %v1107, 0.0
      %1118 = vadd.xlane.f32.xlu0 %v1117
      %v1119 = vpop.xlane.xlu0 %1118
      %v1120 = vpack.c.bf16 %v1101, %v1101
      %v1121 = vpack.c.bf16 %v1103, %v1103
      %v1122 = vpack.c.bf16 %v1105, %v1105
      %v1123 = vpack.c.bf16 %v1107, %v1107
      %1124 = vrot.lane.b32.xlu0 %v241, 40
      %v1125 = vpop.permute.xlu0 %1124
      %v1127 = vsel %vm244, %v1120, 0
      %v1130 = vsel %vm385, %v1125, 0
      %1132 = vmatpush.bf16.msra.mxu0 0
      %1133 = vmatpush.bf16.msra.mxu0 0
      %1134 = vmatpush.bf16.msra.mxu0 0
      %1135 = vmatpush.bf16.msra.mxu0 0
      %1136 = vmatpush.bf16.msra.mxu0 0
      %1137 = vmatpush.bf16.msra.mxu0 0
      %1138 = vmatpush.bf16.msra.mxu0 0
      %1139 = vmatpush.bf16.msra.mxu0 %v1130
      %1140 = vmatmul.bf16.gmra.mxu0 %v1127
      %v1141 = vpop.f32.mrf.mxu0
      %v1142 = vadd.f32 0.0, %v1141
      %v1143 = vpop.f32.mrf.mxu0
      %1144 = vdwg.mxu0
      %1145 = vrot.lane.b32.xlu0 %v266, 40
      %v1146 = vpop.permute.xlu0 %1145
      %v1148 = vsel %vm244, %v1121, 0
      %v1151 = vsel %vm385, %v1146, 0
      %1153 = vmatpush.bf16.msra.mxu0 0
      %1154 = vmatpush.bf16.msra.mxu0 0
      %1155 = vmatpush.bf16.msra.mxu0 0
      %1156 = vmatpush.bf16.msra.mxu0 0
      %1157 = vmatpush.bf16.msra.mxu0 0
      %1158 = vmatpush.bf16.msra.mxu0 0
      %1159 = vmatpush.bf16.msra.mxu0 0
      %1160 = vmatpush.bf16.msra.mxu0 %v1151
      %1161 = vmatmul.bf16.gmra.mxu0 %v1148
      %v1162 = vpop.f32.mrf.mxu0
      %v1163 = vadd.f32 0.0, %v1162
      %v1164 = vpop.f32.mrf.mxu0
      %1165 = vdwg.mxu0
      %1166 = vrot.lane.b32.xlu0 %v290, 40
      %v1167 = vpop.permute.xlu0 %1166
      %v1169 = vsel %vm244, %v1122, 0
      %v1172 = vsel %vm385, %v1167, 0
      %1174 = vmatpush.bf16.msra.mxu0 0
      %1175 = vmatpush.bf16.msra.mxu0 0
      %1176 = vmatpush.bf16.msra.mxu0 0
      %1177 = vmatpush.bf16.msra.mxu0 0
      %1178 = vmatpush.bf16.msra.mxu0 0
      %1179 = vmatpush.bf16.msra.mxu0 0
      %1180 = vmatpush.bf16.msra.mxu0 0
      %1181 = vmatpush.bf16.msra.mxu0 %v1172
      %1182 = vmatmul.bf16.gmra.mxu0 %v1169
      %v1183 = vpop.f32.mrf.mxu0
      %v1184 = vadd.f32 0.0, %v1183
      %v1185 = vpop.f32.mrf.mxu0
      %1186 = vdwg.mxu0
      %1187 = vrot.lane.b32.xlu0 %v314, 40
      %v1188 = vpop.permute.xlu0 %1187
      %v1190 = vsel %vm244, %v1123, 0
      %v1193 = vsel %vm385, %v1188, 0
      %1195 = vmatpush.bf16.msra.mxu0 0
      %1196 = vmatpush.bf16.msra.mxu0 0
      %1197 = vmatpush.bf16.msra.mxu0 0
      %1198 = vmatpush.bf16.msra.mxu0 0
      %1199 = vmatpush.bf16.msra.mxu0 0
      %1200 = vmatpush.bf16.msra.mxu0 0
      %1201 = vmatpush.bf16.msra.mxu0 0
      %1202 = vmatpush.bf16.msra.mxu0 %v1193
      %1203 = vmatmul.bf16.gmra.mxu0 %v1190
      %v1204 = vpop.f32.mrf.mxu0
      %v1205 = vadd.f32 0.0, %v1204
      %v1206 = vpop.f32.mrf.mxu0
      %1207 = vdwg.mxu0
      %v1208 = vrcp.pop %v1110
      %v1209 = vrcp.pop %v1113
      %v1210 = vrcp.pop %v1116
      %v1211 = vrcp.pop %v1119
      %v1212 = vmul.f32 %v1142, %v1208
      %v1213 = vmul.f32 %v1163, %v1209
      %v1214 = vmul.f32 %v1184, %v1210
      %v1215 = vmul.f32 %v1205, %v1211
      %v1216 = vpack.c.bf16 %v1212, %v1212
      %v1217 = vpack.c.bf16 %v1213, %v1213
      %v1218 = vpack.c.bf16 %v1214, %v1214
      %v1219 = vpack.c.bf16 %v1215, %v1215
      %1224 = vrot.lane.b32.xlu0 %v1216, 24
      %v1225 = vpop.permute.xlu0 %1224
      %1226 = vrot.lane.b32.xlu0 %v1217, 24
      %v1227 = vpop.permute.xlu0 %1226
      %1228 = vrot.lane.b32.xlu0 %v1218, 24
      %v1229 = vpop.permute.xlu0 %1228
      %1230 = vrot.lane.b32.xlu0 %v1219, 24
      %v1231 = vpop.permute.xlu0 %1230
      %vm1236 = vcmask 257216
      %1237 = vst.msk [vmem:[#allocation2] sm:$0xf] %vm1236, %v1225
      %1238 = vst.msk [vmem:[#allocation2 + $0x4] sm:$0xf] %vm1236, %v1227
      %1239 = vst.msk [vmem:[#allocation2 + $0x8] sm:$0xf] %vm1236, %v1229
      %1240 = vst.msk [vmem:[#allocation2 + $0xc] sm:$0xf] %vm1236, %v1231
      %v1241 = vld [vmem:[#allocation2] sm:$0xf]
      %v1242 = vld [vmem:[#allocation2 + $0x4] sm:$0xf]
      %v1243 = vld [vmem:[#allocation2 + $0x8] sm:$0xf]
      %v1244 = vld [vmem:[#allocation2 + $0xc] sm:$0xf]
      %v1249 = vunpack.c.l.b16 %v1241
      %v1250 = vunpack.c.l.b16 %v1242
      %v1251 = vunpack.c.l.b16 %v1243
      %v1252 = vunpack.c.l.b16 %v1244
      %v1253 = vpack.c.b16 %v1250, %v1249
      %v1254 = vpack.c.b16 %v1252, %v1251
      %v1259 = vunpack.c.l.b16 %v183
      %v1260 = vunpack.c.l.b16 %v184
      %v1261 = vunpack.c.l.b16 %v185
      %v1262 = vunpack.c.l.b16 %v186
      %v1263 = vpack.c.b16 %v1260, %v1259
      %v1264 = vpack.c.b16 %v1262, %v1261
      %v1268 = vsel %vm209, %v1253, 0
      %v1271 = vsel %vm209, %v1254, 0
      %1273 = vmatpush.bf16.msra.mxu0 0
      %1274 = vmatpush.bf16.msra.mxu0 0
      %1275 = vmatpush.bf16.msra.mxu0 0
      %1276 = vmatpush.bf16.msra.mxu0 0
      %1277 = vmatpush.bf16.msra.mxu0 0
      %1278 = vmatpush.bf16.msra.mxu0 0
      %1279 = vmatpush.bf16.msra.mxu0 %v1264
      %1280 = vmatpush.bf16.msra.mxu0 %v1263
      %1281 = vmatmul.bf16.gmra.mxu0 %v1268
      %v1282 = vpop.f32.mrf.mxu0
      %v1283 = vadd.f32 0.0, %v1282
      %v1284 = vpop.f32.mrf.mxu0
      %v1285 = vadd.f32 0.0, %v1284
      %1286 = vmatmul.bf16.gmra.mxu0 %v1271
      %v1287 = vpop.f32.mrf.mxu0
      %v1288 = vadd.f32 0.0, %v1287
      %v1289 = vpop.f32.mrf.mxu0
      %v1290 = vadd.f32 0.0, %v1289
      %1291 = vdwg.mxu0
      %1292 = vst.msk [vmem:[%s172] sm:$0xff] %vm209, %v1283
      %1293 = vst.msk [vmem:[%s172 + $0x8] sm:$0xff] %vm209, %v1285
      %1294 = vst.msk [vmem:[%s172 + $0x10] sm:$0xff] %vm209, %v1288
      %1295 = vst.msk [vmem:[%s172 + $0x18] sm:$0xff] %vm209, %v1290
      %s1296 = smul.u32 4, %s14
      %p1297 = scmp.lt.s32.totalorder %s1296, 7
      %s1298 = scalar_select %p1297, %s1296, 7
      %s1299 = smul.addr %s1298, 8
      %s1300 = scalar_lea.vmem %s3, %s1299
      // Predicated region
      $region33: #{tpu_custom_call.1} parent=31 // pred_check
        %p1301 = pneg %p100
      $region34: #{tpu_custom_call.1} parent=31 // pred_check_branch
        %1303 = sbr.rel (%p1301) target = $region36
      $region35: #{tpu_custom_call.1} parent=31 // pred_region
        %s1304 = smul.u32 4, %s14
      $region36: #{tpu_custom_call.1} parent=31 // pred_fallthru
        _
    $region32: #{tpu_custom_call.1} parent=5 // pred_fallthru
      _
    %p1305 = scmp.le.s32.totalorder 2, %s9
    // Predicated region
    $region37: #{tpu_custom_call.1} parent=5 // pred_check
      %p1306 = pneg %p1305
    $region38: #{tpu_custom_call.1} parent=5 // pred_check_branch
      %1308 = sbr.rel (%p1306) target = $region40
    $region39: #{tpu_custom_call.1} parent=5 // pred_region
      %s1309 = ssub.s32 %s9, 2
      // Predicated region
      $region41: #{tpu_custom_call.1} parent=39 // pred_check
        %p1310 = pneg %p106
      $region42: #{tpu_custom_call.1} parent=39 // pred_check_branch
        %1312 = sbr.rel (%p1310) target = $region44
      $region43: #{tpu_custom_call.1} parent=39 // pred_region
        %s1313 = smul.u32 4, %s15
        %p1314 = scmp.lt.s32.totalorder %s1313, 7
        %s1315 = scalar_select %p1314, %s1313, 7
        %s1316 = smul.addr %s1315, 8
        %s1317 = scalar_lea.vmem %s3, %s1316
      $region44: #{tpu_custom_call.1} parent=39 // pred_fallthru
        _
    $region40: #{tpu_custom_call.1} parent=5 // pred_fallthru
      _
  $region6: #{tpu_custom_call.1} parent=0 // loop_footer
    %s13 = sadd.s32 1, %s9
  $region7: #{tpu_custom_call.1} parent=0 // loop_footer_branch
    %8 = sbr.rel target = $region3
  $region8: #{tpu_custom_call.1} parent=0 // loop_exit
    _

</llo_original>
